<compile_context>
chip_gen: v7x
topology: tpu7x:2x2x1
jax: 0.10.0
libtpu: 0.0.40
codegen_flags: <defaults>
</compile_context>

<pallas_src>
import jax
import jax.numpy as jnp
from jax.experimental import pallas as pl
from jax.experimental.pallas import tpu as pltpu


def receiver16_kernel(x_ref, w3_ref, w4_ref, w5_ref, ones_ref, b_ref, o_ref):
    HP = w3_ref.shape[1]   # P * hidden
    SP = w5_ref.shape[1]   # P * num_sym

    x = x_ref[...]                                            # (TBG, P*IN) bf16

    # lin3: bf16 x bf16 -> f32 accumulation on the MXU.
    h = jnp.dot(x, w3_ref[...], preferred_element_type=jnp.float32)
    h = h + b_ref[0:1, :HP]                                   # (TBG, P*H) f32
    # NOTE: torch computes F.tanh(h) into chan_out but never uses it -> skipped.

    # lin4 + tanh (activation recast to bf16 for the MXU, f32 accumulate).
    y = jnp.dot(h.astype(jnp.bfloat16), w4_ref[...],
                preferred_element_type=jnp.float32)
    y = jnp.tanh(y + b_ref[1:2, :SP])                         # (TBG, P*S) f32

    # lin5
    z = jnp.dot(y.astype(jnp.bfloat16), w5_ref[...],
                preferred_element_type=jnp.float32)
    z = z + b_ref[2:3, :SP]                                   # (TBG, P*S) f32

    # Softmax over each contiguous S-lane group (= one original batch row).
    # Subtracting the per-row global max is valid because it is a single
    # constant within every group and softmax is shift-invariant; |z| here is
    # tanh/weight-bounded so the global-vs-group max gap cannot underflow exp.
    m = jnp.max(z, axis=1, keepdims=True)
    e = jnp.exp(z - m)                                        # f32, in (0, 1]

    # Per-group sums via a matmul with a block-diagonal ones matrix (MXU slot).
    # hi/lo split keeps the sums exact to ~1e-6 even with bf16 MXU operands,
    # so every softmax row sums to 1 to f32 precision (no approx reciprocal).
    e_hi = e.astype(jnp.bfloat16)
    e_lo = (e - e_hi.astype(jnp.float32)).astype(jnp.bfloat16)
    denom = (jnp.dot(e_hi, ones_ref[...], preferred_element_type=jnp.float32)
             + jnp.dot(e_lo, ones_ref[...], preferred_element_type=jnp.float32))

    o_ref[...] = (e / denom).astype(o_ref.dtype)


def _block_diag(w, p):
    """(fin, fout) -> (p*fin, p*fout): p copies of w on the block diagonal."""
    fin, fout = w.shape
    eye = jnp.eye(p, dtype=w.dtype)
    return (eye[:, None, :, None] * w[None, :, None, :]).reshape(p * fin, p * fout)


def receiver16_forward(x, w3, b3, w4, b4, w5, b5, *,
                       block_rows=8192, out_dtype=jnp.float32):
    """Pallas forward pass. Weights are stored (in_features, out_features)."""
    B, IN = x.shape
    H = w3.shape[1]
    S = w5.shape[1]

    # Pack P batch rows per 128-lane row (P = 16 for num_chan = 4 -> IN = 8).
    P = 128 // IN if (IN <= 128 and 128 % IN == 0) else 1

    # Packed-row tile: multiple of 8 sublanes, >= 2 grid steps when possible
    # (v7x megacore: 2 TensorCores), capped for VMEM headroom on 64-MiB parts.
    G = pl.cdiv(B, P)
    target = max(1, min(block_rows // P, pl.cdiv(G, 2)))
    TBG = min(4096, 8 * pl.cdiv(target, 8))
    G_pad = TBG * pl.cdiv(G, TBG)
    B_pad = G_pad * P

    # x: pad batch, cast to bf16, free row-major repack to (G_pad, P*IN).
    x_b = x.astype(jnp.bfloat16)
    if B_pad != B:
        x_b = jnp.pad(x_b, ((0, B_pad - B), (0, 0)))
    x_p = x_b.reshape(G_pad, P * IN)

    # Block-diagonal resident weights in bf16 (f32 accumulation in-kernel).
    w3_p = _block_diag(w3.astype(jnp.bfloat16), P)            # (P*IN, P*H)
    w4_p = _block_diag(w4.astype(jnp.bfloat16), P)            # (P*H,  P*S)
    w5_p = _block_diag(w5.astype(jnp.bfloat16), P)            # (P*S,  P*S)
    ones_p = _block_diag(jnp.ones((S, S), jnp.bfloat16), P)   # (P*S,  P*S)

    # Consolidated (tiled) f32 bias slab: one DMA instead of three tiny ones.
    BW = max(P * H, P * S)
    biases = jnp.zeros((3, BW), jnp.float32)
    biases = biases.at[0, :P * H].set(jnp.tile(b3.reshape(-1), P))
    biases = biases.at[1, :P * S].set(jnp.tile(b4.reshape(-1), P))
    biases = biases.at[2, :P * S].set(jnp.tile(b5.reshape(-1), P))

    # Grid-invariant operands stay VMEM-resident across grid steps.
    # TODO(synk): pipeline_mode=pl.Buffered(1) on these would drop their
    # redundant second buffer; omitted for interpret-mode compatibility
    # (they total < 1.5 MiB, so VMEM headroom is ample either way).
    resident = lambda arr: pl.BlockSpec(arr.shape, lambda i: (0, 0))

    flops = 2 * B_pad * (IN * H + H * S + 2 * S * S)
    out_bytes = G_pad * P * S * jnp.dtype(out_dtype).itemsize
    weight_bytes = (w3_p.size + w4_p.size + w5_p.size + ones_p.size) * 2
    bytes_accessed = int(x_p.size * 2 + out_bytes + weight_bytes + biases.size * 4)

    out_p = pl.pallas_call(
        receiver16_kernel,
        out_shape=jax.ShapeDtypeStruct((G_pad, P * S), out_dtype),
        grid=(G_pad // TBG,),
        in_specs=[
            pl.BlockSpec((TBG, P * IN), lambda i: (i, 0)),    # x: tiled over batch
            resident(w3_p),
            resident(w4_p),
            resident(w5_p),
            resident(ones_p),                                 # block-diag ones
            resident(biases),                                 # consolidated biases
        ],
        out_specs=pl.BlockSpec((TBG, P * S), lambda i: (i, 0)),  # lane-dense
        compiler_params=pltpu.CompilerParams(
            dimension_semantics=("parallel",),
            vmem_limit_bytes=32 * 1024 * 1024,
        ),
        cost_estimate=pl.CostEstimate(
            flops=int(flops),
            transcendentals=int(2 * B_pad * S),               # tanh + exp
            bytes_accessed=bytes_accessed,
        ),
    )(x_p, w3_p, w4_p, w5_p, ones_p, biases)

    # Free row-major un-pack back to (B_pad, S); drop padded batch rows.
    out = out_p.reshape(B_pad, S)
    return out[:B] if B_pad != B else out


def init_params(key, num_sym, num_chan, hidden):
    """Deterministic synthetic parameters (shapes match the nn.Linear layers)."""
    in_feat = num_chan * 2
    ks = jax.random.split(key, 6)

    def lin(kw, kb, fan_in, fan_out):
        bound = 1.0 / jnp.sqrt(fan_in)
        # stored as (in, out) == torch weight (out, in) transposed
        w = jax.random.uniform(kw, (fan_in, fan_out), jnp.float32, -bound, bound)
        b = jax.random.uniform(kb, (1, fan_out), jnp.float32, -bound, bound)
        return w, b

    w3, b3 = lin(ks[0], ks[1], in_feat, hidden)
    w4, b4 = lin(ks[2], ks[3], hidden, num_sym)
    w5, b5 = lin(ks[4], ks[5], num_sym, num_sym)
    return w3, b3, w4, b4, w5, b5


def reference(x, w3, b3, w4, b4, w5, b5):
    """Pure f32 reference matching the PyTorch module."""
    h = x @ w3 + b3
    y = jnp.tanh(h @ w4 + b4)
    z = y @ w5 + b5
    return jax.nn.softmax(z, axis=1)


if __name__ == "__main__":
    num_sym = 16       # number of symbols
    num_chan = 4       # -> input features = 8 -> 16 rows packed per 128 lanes
    hidden = 32        # hidden_neurons (small for the test)
    batch = 200        # not a multiple of 16 / tile -> exercises packing + padding,
                       # and yields a 2-step "parallel" grid

    key = jax.random.PRNGKey(0)
    k_x, k_p = jax.random.split(key)
    x = jax.random.normal(k_x, (batch, num_chan * 2), jnp.float32)
    params = init_params(k_p, num_sym, num_chan, hidden)

    out = receiver16_forward(x, *params)
    out = jax.block_until_ready(out)

    ref = reference(x, *params)
    assert out.shape == (batch, num_sym)
    # bf16 weights/activations on the MXU -> relaxed vs. the f32 reference
    assert jnp.allclose(out, ref, atol=5e-3), "mismatch vs f32 reference"
    # exact (non-approx) normalization -> rows sum to 1 to ~f32 precision
    assert jnp.allclose(jnp.sum(out, axis=1), 1.0, atol=1e-3), \
        "softmax rows must sum to ~1"

    print("KERNEL_OK")
</pallas_src>

<mosaic_0001>
module attributes {stable_mosaic.version = 11 : i64} {
  func.func @receiver16_kernel(%arg0: i32, %arg1: memref<8x128xbf16, #tpu.memory_space<vmem>>, %arg2: memref<128x512xbf16, #tpu.memory_space<vmem>>, %arg3: memref<512x256xbf16, #tpu.memory_space<vmem>>, %arg4: memref<256x256xbf16, #tpu.memory_space<vmem>>, %arg5: memref<256x256xbf16, #tpu.memory_space<vmem>>, %arg6: memref<3x512xf32, #tpu.memory_space<vmem>>, %arg7: memref<8x256xf32, #tpu.memory_space<vmem>>) attributes {dimension_semantics = [#tpu.dimension_semantics<parallel>], iteration_bounds = array<i64: 2>, scalar_prefetch = 0 : i64, scratch_operands = 0 : i64, tpu.core_type = #tpu.core_type<tc>, window_params = [{transform_indices = @transform_0, window_bounds = array<i64: 8, 128>}, {pipeline_mode = #tpu.pipeline_mode<synchronous>, transform_indices = @transform_1, window_bounds = array<i64: 128, 512>}, {pipeline_mode = #tpu.pipeline_mode<synchronous>, transform_indices = @transform_2, window_bounds = array<i64: 512, 256>}, {pipeline_mode = #tpu.pipeline_mode<synchronous>, transform_indices = @transform_3, window_bounds = array<i64: 256, 256>}, {pipeline_mode = #tpu.pipeline_mode<synchronous>, transform_indices = @transform_4, window_bounds = array<i64: 256, 256>}, {pipeline_mode = #tpu.pipeline_mode<synchronous>, transform_indices = @transform_5, window_bounds = array<i64: 3, 512>}, {transform_indices = @transform_6, window_bounds = array<i64: 8, 256>}]} {
    %c0 = arith.constant 0 : index
    %c0_0 = arith.constant 0 : index
    %0 = vector.load %arg1[%c0, %c0_0] : memref<8x128xbf16, #tpu.memory_space<vmem>>, vector<8x128xbf16>
    %c0_1 = arith.constant 0 : index
    %c0_2 = arith.constant 0 : index
    %1 = vector.load %arg2[%c0_1, %c0_2] : memref<128x512xbf16, #tpu.memory_space<vmem>>, vector<128x512xbf16>
    %cst = arith.constant dense<0.000000e+00> : vector<8x512xf32>
    %2 = tpu.matmul %0, %1, %cst {dimension_numbers = #tpu.dot_dimension_numbers<[1], [0], [0], [1], [0, 0, 1, 1], [], []>} : vector<8x128xbf16>, vector<128x512xbf16>, vector<8x512xf32> -> vector<8x512xf32>
    %c0_3 = arith.constant 0 : index
    %c0_4 = arith.constant 0 : index
    %3 = vector.load %arg6[%c0_3, %c0_4] : memref<3x512xf32, #tpu.memory_space<vmem>>, vector<1x512xf32>
    %4 = vector.broadcast %3 : vector<1x512xf32> to vector<8x512xf32>
    %5 = arith.addf %2, %4 : vector<8x512xf32>
    %6 = arith.truncf %5 : vector<8x512xf32> to vector<8x512xbf16>
    %c0_5 = arith.constant 0 : index
    %c0_6 = arith.constant 0 : index
    %7 = vector.load %arg3[%c0_5, %c0_6] : memref<512x256xbf16, #tpu.memory_space<vmem>>, vector<512x256xbf16>
    %cst_7 = arith.constant dense<0.000000e+00> : vector<8x256xf32>
    %8 = tpu.matmul %6, %7, %cst_7 {dimension_numbers = #tpu.dot_dimension_numbers<[1], [0], [0], [1], [0, 0, 1, 1], [], []>} : vector<8x512xbf16>, vector<512x256xbf16>, vector<8x256xf32> -> vector<8x256xf32>
    %c1 = arith.constant 1 : index
    %c0_8 = arith.constant 0 : index
    %9 = vector.load %arg6[%c1, %c0_8] : memref<3x512xf32, #tpu.memory_space<vmem>>, vector<1x256xf32>
    %10 = vector.broadcast %9 : vector<1x256xf32> to vector<8x256xf32>
    %11 = arith.addf %8, %10 : vector<8x256xf32>
    %12 = math.tanh %11 : vector<8x256xf32>
    %13 = arith.truncf %12 : vector<8x256xf32> to vector<8x256xbf16>
    %c0_9 = arith.constant 0 : index
    %c0_10 = arith.constant 0 : index
    %14 = vector.load %arg4[%c0_9, %c0_10] : memref<256x256xbf16, #tpu.memory_space<vmem>>, vector<256x256xbf16>
    %cst_11 = arith.constant dense<0.000000e+00> : vector<8x256xf32>
    %15 = tpu.matmul %13, %14, %cst_11 {dimension_numbers = #tpu.dot_dimension_numbers<[1], [0], [0], [1], [0, 0, 1, 1], [], []>} : vector<8x256xbf16>, vector<256x256xbf16>, vector<8x256xf32> -> vector<8x256xf32>
    %c2 = arith.constant 2 : index
    %c0_12 = arith.constant 0 : index
    %16 = vector.load %arg6[%c2, %c0_12] : memref<3x512xf32, #tpu.memory_space<vmem>>, vector<1x256xf32>
    %17 = vector.broadcast %16 : vector<1x256xf32> to vector<8x256xf32>
    %18 = arith.addf %15, %17 : vector<8x256xf32>
    %cst_13 = arith.constant dense<0xFF800000> : vector<8xf32>
    %19 = vector.multi_reduction <maximumf>, %18, %cst_13 [1] : vector<8x256xf32> to vector<8xf32>
    %20 = vector.shape_cast %19 : vector<8xf32> to vector<8x1xf32>
    %21 = vector.broadcast %20 : vector<8x1xf32> to vector<8x256xf32>
    %22 = arith.subf %18, %21 : vector<8x256xf32>
    %23 = math.exp %22 : vector<8x256xf32>
    %24 = arith.truncf %23 : vector<8x256xf32> to vector<8x256xbf16>
    %25 = arith.extf %24 : vector<8x256xbf16> to vector<8x256xf32>
    %26 = arith.subf %23, %25 : vector<8x256xf32>
    %27 = arith.truncf %26 : vector<8x256xf32> to vector<8x256xbf16>
    %c0_14 = arith.constant 0 : index
    %c0_15 = arith.constant 0 : index
    %28 = vector.load %arg5[%c0_14, %c0_15] : memref<256x256xbf16, #tpu.memory_space<vmem>>, vector<256x256xbf16>
    %cst_16 = arith.constant dense<0.000000e+00> : vector<8x256xf32>
    %29 = tpu.matmul %24, %28, %cst_16 {dimension_numbers = #tpu.dot_dimension_numbers<[1], [0], [0], [1], [0, 0, 1, 1], [], []>} : vector<8x256xbf16>, vector<256x256xbf16>, vector<8x256xf32> -> vector<8x256xf32>
    %c0_17 = arith.constant 0 : index
    %c0_18 = arith.constant 0 : index
    %30 = vector.load %arg5[%c0_17, %c0_18] : memref<256x256xbf16, #tpu.memory_space<vmem>>, vector<256x256xbf16>
    %cst_19 = arith.constant dense<0.000000e+00> : vector<8x256xf32>
    %31 = tpu.matmul %27, %30, %cst_19 {dimension_numbers = #tpu.dot_dimension_numbers<[1], [0], [0], [1], [0, 0, 1, 1], [], []>} : vector<8x256xbf16>, vector<256x256xbf16>, vector<8x256xf32> -> vector<8x256xf32>
    %32 = arith.addf %29, %31 : vector<8x256xf32>
    %33 = arith.divf %23, %32 : vector<8x256xf32>
    %c0_20 = arith.constant 0 : index
    %c0_21 = arith.constant 0 : index
    %34 = vector.load %arg7[%c0_20, %c0_21] : memref<8x256xf32, #tpu.memory_space<vmem>>, vector<8x256xf32>
    tpu.vector_store %arg7[%c0_20, %c0_21], %33 {strides = array<i32>} : memref<8x256xf32, #tpu.memory_space<vmem>>, vector<8x256xf32>,
    return
  }
  func.func @transform_0(%arg0: i32) -> (i32, i32) {
    %c0_i32 = arith.constant 0 : i32
    %c0_i32_0 = arith.constant 0 : i32
    return %arg0, %c0_i32 : i32, i32
  }
  func.func @transform_1(%arg0: i32) -> (i32, i32) {
    %c0_i32 = arith.constant 0 : i32
    %c0_i32_0 = arith.constant 0 : i32
    %c0_i32_1 = arith.constant 0 : i32
    return %c0_i32, %c0_i32_0 : i32, i32
  }
  func.func @transform_2(%arg0: i32) -> (i32, i32) {
    %c0_i32 = arith.constant 0 : i32
    %c0_i32_0 = arith.constant 0 : i32
    %c0_i32_1 = arith.constant 0 : i32
    return %c0_i32, %c0_i32_0 : i32, i32
  }
  func.func @transform_3(%arg0: i32) -> (i32, i32) {
    %c0_i32 = arith.constant 0 : i32
    %c0_i32_0 = arith.constant 0 : i32
    %c0_i32_1 = arith.constant 0 : i32
    return %c0_i32, %c0_i32_0 : i32, i32
  }
  func.func @transform_4(%arg0: i32) -> (i32, i32) {
    %c0_i32 = arith.constant 0 : i32
    %c0_i32_0 = arith.constant 0 : i32
    %c0_i32_1 = arith.constant 0 : i32
    return %c0_i32, %c0_i32_0 : i32, i32
  }
  func.func @transform_5(%arg0: i32) -> (i32, i32) {
    %c0_i32 = arith.constant 0 : i32
    %c0_i32_0 = arith.constant 0 : i32
    %c0_i32_1 = arith.constant 0 : i32
    return %c0_i32, %c0_i32_0 : i32, i32
  }
  func.func @transform_6(%arg0: i32) -> (i32, i32) {
    %c0_i32 = arith.constant 0 : i32
    %c0_i32_0 = arith.constant 0 : i32
    return %arg0, %c0_i32 : i32, i32
  }
}

</mosaic_0001>

<llo_original>
// kernel: tpu_custom_call.1
$region0: #{tpu_custom_call.1}
  #allocation0 [shape = 'u32[]', space=smem, size = 0x4, offset = 0x4, fixed_abs, tag = 'smem constant byte address 0x4 - core index']
  #allocation1 [shape = 'u32[144,128]{1,0:T(1,128)}', space=vmem, size = 0x12000, scoped, tag = 'internal scratch']
  %s0 = inlined_call_operand.hbm [shape: bf16[16,128], index: 0, kind: input, shape index: {}]
  %s1 = inlined_call_operand.hbm [shape: bf16[128,512], index: 1, kind: input, shape index: {}]
  %s2 = inlined_call_operand.hbm [shape: bf16[512,256], index: 2, kind: input, shape index: {}]
  %s3 = inlined_call_operand.hbm [shape: bf16[256,256], index: 3, kind: input, shape index: {}]
  %s4 = inlined_call_operand.hbm [shape: bf16[256,256], index: 4, kind: input, shape index: {}]
  %s5 = inlined_call_operand.vmem [shape: f32[3,512], index: 5, kind: input, shape index: {}]
  %s6 = inlined_call_operand.hbm [shape: f32[16,256], index: 6, kind: output, shape index: {}]
  %s7 = sld [smem:[#allocation0]]
  $region77: #{tpu_custom_call.1} parent=0
    _
  %s9 = ssub.s32 1, %s7
  %s10 = scalar_select 0, %s9, %s7
  $region1: #{tpu_custom_call.1} parent=0
    #allocation2 [shape = 'u8[4096]{0}', space=vmem, size = 0x1000, scoped, tag = 'input window, operand 0']
    #allocation3 [shape = 's32[2]{0}', space=sflag, size = 0x8, scoped, tag = 'scoped memory for tpu_custom_call.1']
    #allocation4 [shape = 's32[2]{0}', space=sflag, size = 0x8, scoped, tag = 'scoped memory for tpu_custom_call.1']
    #allocation5 [shape = 'u8[131072]{0}', space=vmem, size = 0x20000, scoped, tag = 'input window, operand 1, single buffered']
    #allocation6 [shape = 's32[1]{0}', space=sflag, size = 0x4, scoped, tag = 'scoped memory for tpu_custom_call.1']
    #allocation7 [shape = 'u8[262144]{0}', space=vmem, size = 0x40000, scoped, tag = 'input window, operand 2, single buffered']
    #allocation8 [shape = 'u8[131072]{0}', space=vmem, size = 0x20000, scoped, tag = 'input window, operand 3, single buffered']
    #allocation9 [shape = 's32[1]{0}', space=sflag, size = 0x4, scoped, tag = 'scoped memory for tpu_custom_call.1']
    #allocation10 [shape = 'u8[131072]{0}', space=vmem, size = 0x20000, scoped, tag = 'input window, operand 4, single buffered']
    #allocation11 [shape = 'u8[16384]{0}', space=vmem, size = 0x4000, scoped, tag = 'output window, operand 0']
    %11 = vsyncpa [#allocation3], 0
    %s12 = scalar_lea.sflag [#allocation3], 1
    %13 = vsyncpa %s12, 0
    %14 = vsyncpa [#allocation6], 0
    %15 = vsyncpa [#allocation9], 0
    %16 = vsyncpa [#allocation4], 0
    %s17 = scalar_lea.sflag [#allocation4], 1
    %18 = vsyncpa %s17, 0
    loop: start=0, step=1, limit=4
    $region2: #{tpu_custom_call.1} parent=1 // loop_pre_header
      _
    $region3: #{tpu_custom_call.1} parent=1 // loop_header
      %s20 = sphi 0, %s24
      %p21 = scmp.ge.s32.totalorder %s20, 4
      %s30 = sphi 0, %s32
      %s33 = sphi 0, %s30
      %s34 = sphi 0, %s33
      %s50 = sphi 0, %s34
      %s54 = sphi 0, %s54
      %s56 = sphi 0, %s54
      %s57 = sphi 0, %s56
      %s71 = sphi 0, %s57
      %s75 = sphi 0, %s75
      %s77 = sphi 0, %s75
      %s78 = sphi 0, %s77
      %s92 = sphi 0, %s78
      %s96 = sphi 0, %s96
      %s98 = sphi 0, %s96
      %s99 = sphi 0, %s98
      %s113 = sphi 0, %s99
      %s117 = sphi 0, %s117
      %s119 = sphi 0, %s117
      %s120 = sphi 0, %s119
      %s134 = sphi 0, %s120
      %s138 = sphi 0, %s138
      %s140 = sphi 0, %s138
      %s141 = sphi 0, %s140
      %s155 = sphi 0, %s141
      %s161 = sphi 0, %s163
      %s164 = sphi 0, %s161
      %s165 = sphi 0, %s164
      %s181 = sphi 0, %s165
    $region4: #{tpu_custom_call.1} parent=1 // loop_header_branch
      %23 = sbr.rel (%p21) target = $region8
    $region5: #{tpu_custom_call.1} parent=1 // loop_body
      %s25 = ssub.s32 %s20, 1
      %s26 = ssub.s32 %s20, 2
      %s27 = sadd.s32 %s20, 1
      %s28 = ssub.s32 %s20, %s27
      %p29 = scmp.eq.s32.totalorder %s28, 0
      %s31 = sadd.s32 %s30, 1
      %s32 = scalar_select %p29, %s30, %s31
      %p35 = pneg %p29
      %p36 = scmp.eq.s32.totalorder %s20, 1
      %p37 = por %p35, %p36
      %p38 = scmp.ne.s32.totalorder %s30, %s33
      %p39 = scmp.eq.s32.totalorder %s20, 0
      %p40 = por %p38, %p39
      %p41 = scmp.ne.s32.totalorder %s30, %s33
      %p42 = scmp.eq.s32.totalorder %s25, 1
      %p43 = por %p41, %p42
      %p44 = scmp.ne.s32.totalorder %s33, %s34
      %p45 = scmp.eq.s32.totalorder %s25, 0
      %p46 = por %p44, %p45
      %p47 = scmp.ne.s32.totalorder %s33, %s34
      %p48 = scmp.eq.s32.totalorder %s26, 1
      %p49 = por %p47, %p48
      %p51 = scmp.ne.s32.totalorder %s34, %s50
      %p52 = scmp.eq.s32.totalorder %s26, 0
      %p53 = por %p51, %p52
      %s55 = sadd.s32 %s54, 1
      %p58 = scmp.eq.s32.totalorder %s20, 1
      %p59 = scmp.ne.s32.totalorder %s54, %s56
      %p60 = scmp.eq.s32.totalorder %s20, 0
      %p61 = por %p59, %p60
      %p62 = scmp.ne.s32.totalorder %s54, %s56
      %p63 = scmp.eq.s32.totalorder %s25, 1
      %p64 = por %p62, %p63
      %p65 = scmp.ne.s32.totalorder %s56, %s57
      %p66 = scmp.eq.s32.totalorder %s25, 0
      %p67 = por %p65, %p66
      %p68 = scmp.ne.s32.totalorder %s56, %s57
      %p69 = scmp.eq.s32.totalorder %s26, 1
      %p70 = por %p68, %p69
      %p72 = scmp.ne.s32.totalorder %s57, %s71
      %p73 = scmp.eq.s32.totalorder %s26, 0
      %p74 = por %p72, %p73
      %s76 = sadd.s32 %s75, 1
      %p79 = scmp.eq.s32.totalorder %s20, 1
      %p80 = scmp.ne.s32.totalorder %s75, %s77
      %p81 = scmp.eq.s32.totalorder %s20, 0
      %p82 = por %p80, %p81
      %p83 = scmp.ne.s32.totalorder %s75, %s77
      %p84 = scmp.eq.s32.totalorder %s25, 1
      %p85 = por %p83, %p84
      %p86 = scmp.ne.s32.totalorder %s77, %s78
      %p87 = scmp.eq.s32.totalorder %s25, 0
      %p88 = por %p86, %p87
      %p89 = scmp.ne.s32.totalorder %s77, %s78
      %p90 = scmp.eq.s32.totalorder %s26, 1
      %p91 = por %p89, %p90
      %p93 = scmp.ne.s32.totalorder %s78, %s92
      %p94 = scmp.eq.s32.totalorder %s26, 0
      %p95 = por %p93, %p94
      %s97 = sadd.s32 %s96, 1
      %p100 = scmp.eq.s32.totalorder %s20, 1
      %p101 = scmp.ne.s32.totalorder %s96, %s98
      %p102 = scmp.eq.s32.totalorder %s20, 0
      %p103 = por %p101, %p102
      %p104 = scmp.ne.s32.totalorder %s96, %s98
      %p105 = scmp.eq.s32.totalorder %s25, 1
      %p106 = por %p104, %p105
      %p107 = scmp.ne.s32.totalorder %s98, %s99
      %p108 = scmp.eq.s32.totalorder %s25, 0
      %p109 = por %p107, %p108
      %p110 = scmp.ne.s32.totalorder %s98, %s99
      %p111 = scmp.eq.s32.totalorder %s26, 1
      %p112 = por %p110, %p111
      %p114 = scmp.ne.s32.totalorder %s99, %s113
      %p115 = scmp.eq.s32.totalorder %s26, 0
      %p116 = por %p114, %p115
      %s118 = sadd.s32 %s117, 1
      %p121 = scmp.eq.s32.totalorder %s20, 1
      %p122 = scmp.ne.s32.totalorder %s117, %s119
      %p123 = scmp.eq.s32.totalorder %s20, 0
      %p124 = por %p122, %p123
      %p125 = scmp.ne.s32.totalorder %s117, %s119
      %p126 = scmp.eq.s32.totalorder %s25, 1
      %p127 = por %p125, %p126
      %p128 = scmp.ne.s32.totalorder %s119, %s120
      %p129 = scmp.eq.s32.totalorder %s25, 0
      %p130 = por %p128, %p129
      %p131 = scmp.ne.s32.totalorder %s119, %s120
      %p132 = scmp.eq.s32.totalorder %s26, 1
      %p133 = por %p131, %p132
      %p135 = scmp.ne.s32.totalorder %s120, %s134
      %p136 = scmp.eq.s32.totalorder %s26, 0
      %p137 = por %p135, %p136
      %s139 = sadd.s32 %s138, 1
      %p142 = scmp.eq.s32.totalorder %s20, 1
      %p143 = scmp.ne.s32.totalorder %s138, %s140
      %p144 = scmp.eq.s32.totalorder %s20, 0
      %p145 = por %p143, %p144
      %p146 = scmp.ne.s32.totalorder %s138, %s140
      %p147 = scmp.eq.s32.totalorder %s25, 1
      %p148 = por %p146, %p147
      %p149 = scmp.ne.s32.totalorder %s140, %s141
      %p150 = scmp.eq.s32.totalorder %s25, 0
      %p151 = por %p149, %p150
      %p152 = scmp.ne.s32.totalorder %s140, %s141
      %p153 = scmp.eq.s32.totalorder %s26, 1
      %p154 = por %p152, %p153
      %p156 = scmp.ne.s32.totalorder %s141, %s155
      %p157 = scmp.eq.s32.totalorder %s26, 0
      %p158 = por %p156, %p157
      %s159 = ssub.s32 %s20, %s27
      %p160 = scmp.eq.s32.totalorder %s159, 0
      %s162 = sadd.s32 %s161, 1
      %s163 = scalar_select %p160, %s161, %s162
      %p166 = pneg %p160
      %p167 = scmp.eq.s32.totalorder %s20, 1
      %p168 = por %p166, %p167
      %p169 = scmp.ne.s32.totalorder %s161, %s164
      %p170 = scmp.eq.s32.totalorder %s20, 0
      %p171 = por %p169, %p170
      %p172 = scmp.ne.s32.totalorder %s161, %s164
      %p173 = scmp.eq.s32.totalorder %s25, 1
      %p174 = por %p172, %p173
      %p175 = scmp.ne.s32.totalorder %s164, %s165
      %p176 = scmp.eq.s32.totalorder %s25, 0
      %p177 = por %p175, %p176
      %p178 = scmp.ne.s32.totalorder %s164, %s165
      %p179 = scmp.eq.s32.totalorder %s26, 1
      %p180 = por %p178, %p179
      %p182 = scmp.ne.s32.totalorder %s165, %s181
      %p183 = scmp.eq.s32.totalorder %s26, 0
      %p184 = por %p182, %p183
      %p185 = scmp.le.s32.totalorder 1, %s20
      %p186 = scmp.lt.s32.totalorder %s20, 3
      %p187 = pnand %p185, %p186
      %p188 = pneg %p187
      // Predicated region
      $region9: #{tpu_custom_call.1} parent=5 // pred_check
        _
      $region10: #{tpu_custom_call.1} parent=5 // pred_check_branch
        %190 = sbr.rel (%p187) target = $region12
      $region11: #{tpu_custom_call.1} parent=5 // pred_region
        %s191 = ssub.s32 %s20, 1
        // Predicated region
        $region13: #{tpu_custom_call.1} parent=11 // pred_check
          %p192 = pneg %p67
        $region14: #{tpu_custom_call.1} parent=11 // pred_check_branch
          %194 = sbr.rel (%p192) target = $region16
        $region15: #{tpu_custom_call.1} parent=11 // pred_region
          %s196 = ssub.s32 4096, 4096
          %197 = vsyncadd [#allocation6], %s196
          %s198 = sshll.u32 [#allocation5], 4
          %s199 = int_to_ptr.vmem [resolvable:$true] %s198
          %204 = dma.hbm_to_vmem [thread:$0]  %s1, 4096, %s199, [#allocation6], 256, 256, 16
        $region16: #{tpu_custom_call.1} parent=11 // pred_fallthru
          _
        // Predicated region
        $region17: #{tpu_custom_call.1} parent=11 // pred_check
          %p205 = pneg %p88
        $region18: #{tpu_custom_call.1} parent=11 // pred_check_branch
          %207 = sbr.rel (%p205) target = $region20
        $region19: #{tpu_custom_call.1} parent=11 // pred_region
          %s209 = ssub.s32 8192, 8192
          %210 = vsyncadd [#allocation6], %s209
          %s211 = sshll.u32 [#allocation7], 4
          %s212 = int_to_ptr.vmem [resolvable:$true] %s211
          %217 = dma.hbm_to_vmem [thread:$0]  %s2, 8192, %s212, [#allocation6], 128, 128, 8
        $region20: #{tpu_custom_call.1} parent=11 // pred_fallthru
          _
        // Predicated region
        $region21: #{tpu_custom_call.1} parent=11 // pred_check
          %p218 = pneg %p109
        $region22: #{tpu_custom_call.1} parent=11 // pred_check_branch
          %220 = sbr.rel (%p218) target = $region24
        $region23: #{tpu_custom_call.1} parent=11 // pred_region
          %s222 = ssub.s32 4096, 4096
          %223 = vsyncadd [#allocation9], %s222
          %s224 = sshll.u32 [#allocation8], 4
          %s225 = int_to_ptr.vmem [resolvable:$true] %s224
          %230 = dma.hbm_to_vmem [thread:$0]  %s3, 4096, %s225, [#allocation9], 128, 128, 8
        $region24: #{tpu_custom_call.1} parent=11 // pred_fallthru
          _
        // Predicated region
        $region25: #{tpu_custom_call.1} parent=11 // pred_check
          %p231 = pneg %p130
        $region26: #{tpu_custom_call.1} parent=11 // pred_check_branch
          %233 = sbr.rel (%p231) target = $region28
        $region27: #{tpu_custom_call.1} parent=11 // pred_region
          %s235 = ssub.s32 4096, 4096
          %236 = vsyncadd [#allocation9], %s235
          %s237 = sshll.u32 [#allocation10], 4
          %s238 = int_to_ptr.vmem [resolvable:$true] %s237
          %243 = dma.hbm_to_vmem [thread:$0]  %s4, 4096, %s238, [#allocation9], 128, 128, 8
        $region28: #{tpu_custom_call.1} parent=11 // pred_fallthru
          _
        // Predicated region
        $region29: #{tpu_custom_call.1} parent=11 // pred_check
          %p244 = pneg %p151
        $region30: #{tpu_custom_call.1} parent=11 // pred_check_branch
          %246 = sbr.rel (%p244) target = $region32
        $region31: #{tpu_custom_call.1} parent=11 // pred_region
          _
        $region32: #{tpu_custom_call.1} parent=11 // pred_fallthru
          _
      $region12: #{tpu_custom_call.1} parent=5 // pred_fallthru
        _
      %p247 = scmp.lt.s32.totalorder %s20, 2
      // Predicated region
      $region33: #{tpu_custom_call.1} parent=5 // pred_check
        %p248 = pneg %p247
      $region34: #{tpu_custom_call.1} parent=5 // pred_check_branch
        %250 = sbr.rel (%p248) target = $region36
      $region35: #{tpu_custom_call.1} parent=5 // pred_region
        // Predicated region
        $region37: #{tpu_custom_call.1} parent=35 // pred_check
          %p251 = pneg %p40
        $region38: #{tpu_custom_call.1} parent=35 // pred_check_branch
          %253 = sbr.rel (%p251) target = $region40
        $region39: #{tpu_custom_call.1} parent=35 // pred_region
          %s254 = sand.u32 %s30, 1
          %s255 = scalar_lea.sflag [#allocation3], %s254
          %s256 = sand.u32 %s30, 1
          %s257 = smul.addr %s256, 4
          %s258 = scalar_lea.vmem [#allocation2], %s257
          %s260 = ssub.s32 64, 64
          %261 = vsyncadd %s255, %s260
          %s262 = smul.addr %s20, 64
          %s263 = scalar_lea.hbm %s0, %s262
          %s265 = sshll.u32 %s258, 4
          %s266 = int_to_ptr.vmem [resolvable:$true] %s265
          %268 = dma.hbm_to_vmem [thread:$0]  %s263, 64, %s266, %s255
        $region40: #{tpu_custom_call.1} parent=35 // pred_fallthru
          _
      $region36: #{tpu_custom_call.1} parent=5 // pred_fallthru
        _
      %p269 = scmp.le.s32.totalorder 1, %s20
      %p270 = scmp.lt.s32.totalorder %s20, 3
      %p271 = pnand %p269, %p270
      %p272 = pneg %p271
      // Predicated region
      $region41: #{tpu_custom_call.1} parent=5 // pred_check
        _
      $region42: #{tpu_custom_call.1} parent=5 // pred_check_branch
        %274 = sbr.rel (%p271) target = $region44
      $region43: #{tpu_custom_call.1} parent=5 // pred_region
        %s275 = ssub.s32 %s20, 1
        %s276 = sand.u32 %s33, 1
        %s277 = scalar_lea.sflag [#allocation3], %s276
        %s278 = sand.u32 %s33, 1
        %s279 = smul.addr %s278, 4
        %s280 = scalar_lea.vmem [#allocation2], %s279
        // Predicated region
        $region45: #{tpu_custom_call.1} parent=43 // pred_check
          %p281 = pneg %p46
        $region46: #{tpu_custom_call.1} parent=43 // pred_check_branch
          %283 = sbr.rel (%p281) target = $region48
        $region47: #{tpu_custom_call.1} parent=43 // pred_region
          %284 = dma.done %s277, 64
        $region48: #{tpu_custom_call.1} parent=43 // pred_fallthru
          _
        // Predicated region
        $region49: #{tpu_custom_call.1} parent=43 // pred_check
          %p285 = pneg %p67
        $region50: #{tpu_custom_call.1} parent=43 // pred_check_branch
          %287 = sbr.rel (%p285) target = $region52
        $region51: #{tpu_custom_call.1} parent=43 // pred_region
          %288 = dma.done [#allocation6], 4096
        $region52: #{tpu_custom_call.1} parent=43 // pred_fallthru
          _
        // Predicated region
        $region53: #{tpu_custom_call.1} parent=43 // pred_check
          %p289 = pneg %p88
        $region54: #{tpu_custom_call.1} parent=43 // pred_check_branch
          %291 = sbr.rel (%p289) target = $region56
        $region55: #{tpu_custom_call.1} parent=43 // pred_region
          %292 = dma.done [#allocation6], 8192
        $region56: #{tpu_custom_call.1} parent=43 // pred_fallthru
          _
        // Predicated region
        $region57: #{tpu_custom_call.1} parent=43 // pred_check
          %p293 = pneg %p109
        $region58: #{tpu_custom_call.1} parent=43 // pred_check_branch
          %295 = sbr.rel (%p293) target = $region60
        $region59: #{tpu_custom_call.1} parent=43 // pred_region
          %296 = dma.done [#allocation9], 4096
        $region60: #{tpu_custom_call.1} parent=43 // pred_fallthru
          _
        // Predicated region
        $region61: #{tpu_custom_call.1} parent=43 // pred_check
          %p297 = pneg %p130
        $region62: #{tpu_custom_call.1} parent=43 // pred_check_branch
          %299 = sbr.rel (%p297) target = $region64
        $region63: #{tpu_custom_call.1} parent=43 // pred_region
          %300 = dma.done [#allocation9], 4096
        $region64: #{tpu_custom_call.1} parent=43 // pred_fallthru
          _
        %s301 = sand.u32 %s33, 1
        %s302 = scalar_lea.sflag [#allocation3], %s301
        %s303 = sand.u32 %s33, 1
        %s304 = smul.addr %s303, 4
        %s305 = scalar_lea.vmem [#allocation2], %s304
        %p306 = pneg %p46
        %p307 = pneg %p43
        %p308 = pneg %p67
        %p309 = pneg %p64
        %p310 = pneg %p88
        %p311 = pneg %p85
        %p312 = pneg %p109
        %p313 = pneg %p106
        %p314 = pneg %p130
        %p315 = pneg %p127
        %p316 = pneg %p151
        %p317 = pneg %p148
        %p318 = pneg %p177
        %p319 = pneg %p174
        %s320 = sand.u32 %s164, 1
        %s321 = scalar_lea.sflag [#allocation4], %s320
        %s322 = sand.u32 %s164, 1
        %s323 = smul.addr %s322, 16
        %s324 = scalar_lea.vmem [#allocation11], %s323
        %v326 = vld [vmem:[%s280] sm:$0xf]
        %v327 = vld [vmem:[#allocation5] sm:$0xff]
        %v328 = vld [vmem:[#allocation5 + $0x8] sm:$0xff]
        %v329 = vld [vmem:[#allocation5 + $0x10] sm:$0xff]
        %v330 = vld [vmem:[#allocation5 + $0x18] sm:$0xff]
        %v331 = vld [vmem:[#allocation5 + $0x20] sm:$0xff]
        %v332 = vld [vmem:[#allocation5 + $0x28] sm:$0xff]
        %v333 = vld [vmem:[#allocation5 + $0x30] sm:$0xff]
        %v334 = vld [vmem:[#allocation5 + $0x38] sm:$0xff]
        %v335 = vld [vmem:[#allocation5 + $0x40] sm:$0xff]
        %v336 = vld [vmem:[#allocation5 + $0x48] sm:$0xff]
        %v337 = vld [vmem:[#allocation5 + $0x50] sm:$0xff]
        %v338 = vld [vmem:[#allocation5 + $0x58] sm:$0xff]
        %v339 = vld [vmem:[#allocation5 + $0x60] sm:$0xff]
        %v340 = vld [vmem:[#allocation5 + $0x68] sm:$0xff]
        %v341 = vld [vmem:[#allocation5 + $0x70] sm:$0xff]
        %v342 = vld [vmem:[#allocation5 + $0x78] sm:$0xff]
        %v343 = vld [vmem:[#allocation5 + $0x80] sm:$0xff]
        %v344 = vld [vmem:[#allocation5 + $0x88] sm:$0xff]
        %v345 = vld [vmem:[#allocation5 + $0x90] sm:$0xff]
        %v346 = vld [vmem:[#allocation5 + $0x98] sm:$0xff]
        %v347 = vld [vmem:[#allocation5 + $0xa0] sm:$0xff]
        %v348 = vld [vmem:[#allocation5 + $0xa8] sm:$0xff]
        %v349 = vld [vmem:[#allocation5 + $0xb0] sm:$0xff]
        %v350 = vld [vmem:[#allocation5 + $0xb8] sm:$0xff]
        %v351 = vld [vmem:[#allocation5 + $0xc0] sm:$0xff]
        %v352 = vld [vmem:[#allocation5 + $0xc8] sm:$0xff]
        %v353 = vld [vmem:[#allocation5 + $0xd0] sm:$0xff]
        %v354 = vld [vmem:[#allocation5 + $0xd8] sm:$0xff]
        %v355 = vld [vmem:[#allocation5 + $0xe0] sm:$0xff]
        %v356 = vld [vmem:[#allocation5 + $0xe8] sm:$0xff]
        %v357 = vld [vmem:[#allocation5 + $0xf0] sm:$0xff]
        %v358 = vld [vmem:[#allocation5 + $0xf8] sm:$0xff]
        %v359 = vld [vmem:[%s5] ss:$4 sm:$0xf]
        %v361 = vlaneseq
        %v362 = vshrl.u32 %v361, 7
        %v363 = vsub.s32 0, %v362
        %v364 = vrot.slane %v359, %v363
        %v365 = vlaneseq
        %v366 = vshrl.u32 %v365, 7
        %v367 = vsub.s32 1, %v366
        %v368 = vrot.slane %v359, %v367
        %v369 = vlaneseq
        %v370 = vshrl.u32 %v369, 7
        %v371 = vsub.s32 2, %v370
        %v372 = vrot.slane %v359, %v371
        %v373 = vlaneseq
        %v374 = vshrl.u32 %v373, 7
        %v375 = vsub.s32 3, %v374
        %v376 = vrot.slane %v359, %v375
        %v413 = vunpack.c.l.b16 %v327
        %v414 = vunpack.c.h.b16 %v327
        %v415 = vunpack.c.l.b16 %v328
        %v416 = vunpack.c.h.b16 %v328
        %v417 = vunpack.c.l.b16 %v329
        %v418 = vunpack.c.h.b16 %v329
        %v419 = vunpack.c.l.b16 %v330
        %v420 = vunpack.c.h.b16 %v330
        %v421 = vunpack.c.l.b16 %v331
        %v422 = vunpack.c.h.b16 %v331
        %v423 = vunpack.c.l.b16 %v332
        %v424 = vunpack.c.h.b16 %v332
        %v425 = vunpack.c.l.b16 %v333
        %v426 = vunpack.c.h.b16 %v333
        %v427 = vunpack.c.l.b16 %v334
        %v428 = vunpack.c.h.b16 %v334
        %v429 = vunpack.c.l.b16 %v335
        %v430 = vunpack.c.h.b16 %v335
        %v431 = vunpack.c.l.b16 %v336
        %v432 = vunpack.c.h.b16 %v336
        %v433 = vunpack.c.l.b16 %v337
        %v434 = vunpack.c.h.b16 %v337
        %v435 = vunpack.c.l.b16 %v338
        %v436 = vunpack.c.h.b16 %v338
        %v437 = vunpack.c.l.b16 %v339
        %v438 = vunpack.c.h.b16 %v339
        %v439 = vunpack.c.l.b16 %v340
        %v440 = vunpack.c.h.b16 %v340
        %v441 = vunpack.c.l.b16 %v341
        %v442 = vunpack.c.h.b16 %v341
        %v443 = vunpack.c.l.b16 %v342
        %v444 = vunpack.c.h.b16 %v342
        %v445 = vunpack.c.l.b16 %v343
        %v446 = vunpack.c.h.b16 %v343
        %v447 = vunpack.c.l.b16 %v344
        %v448 = vunpack.c.h.b16 %v344
        %v449 = vunpack.c.l.b16 %v345
        %v450 = vunpack.c.h.b16 %v345
        %v451 = vunpack.c.l.b16 %v346
        %v452 = vunpack.c.h.b16 %v346
        %v453 = vunpack.c.l.b16 %v347
        %v454 = vunpack.c.h.b16 %v347
        %v455 = vunpack.c.l.b16 %v348
        %v456 = vunpack.c.h.b16 %v348
        %v457 = vunpack.c.l.b16 %v349
        %v458 = vunpack.c.h.b16 %v349
        %v459 = vunpack.c.l.b16 %v350
        %v460 = vunpack.c.h.b16 %v350
        %v461 = vunpack.c.l.b16 %v351
        %v462 = vunpack.c.h.b16 %v351
        %v463 = vunpack.c.l.b16 %v352
        %v464 = vunpack.c.h.b16 %v352
        %v465 = vunpack.c.l.b16 %v353
        %v466 = vunpack.c.h.b16 %v353
        %v467 = vunpack.c.l.b16 %v354
        %v468 = vunpack.c.h.b16 %v354
        %v469 = vunpack.c.l.b16 %v355
        %v470 = vunpack.c.h.b16 %v355
        %v471 = vunpack.c.l.b16 %v356
        %v472 = vunpack.c.h.b16 %v356
        %v473 = vunpack.c.l.b16 %v357
        %v474 = vunpack.c.h.b16 %v357
        %v475 = vunpack.c.l.b16 %v358
        %v476 = vunpack.c.h.b16 %v358
        %v477 = vpack.c.b16 %v417, %v413
        %v478 = vpack.c.b16 %v418, %v414
        %v479 = vpack.c.b16 %v419, %v415
        %v480 = vpack.c.b16 %v420, %v416
        %v481 = vpack.c.b16 %v425, %v421
        %v482 = vpack.c.b16 %v426, %v422
        %v483 = vpack.c.b16 %v427, %v423
        %v484 = vpack.c.b16 %v428, %v424
        %v485 = vpack.c.b16 %v433, %v429
        %v486 = vpack.c.b16 %v434, %v430
        %v487 = vpack.c.b16 %v435, %v431
        %v488 = vpack.c.b16 %v436, %v432
        %v489 = vpack.c.b16 %v441, %v437
        %v490 = vpack.c.b16 %v442, %v438
        %v491 = vpack.c.b16 %v443, %v439
        %v492 = vpack.c.b16 %v444, %v440
        %v493 = vpack.c.b16 %v449, %v445
        %v494 = vpack.c.b16 %v450, %v446
        %v495 = vpack.c.b16 %v451, %v447
        %v496 = vpack.c.b16 %v452, %v448
        %v497 = vpack.c.b16 %v457, %v453
        %v498 = vpack.c.b16 %v458, %v454
        %v499 = vpack.c.b16 %v459, %v455
        %v500 = vpack.c.b16 %v460, %v456
        %v501 = vpack.c.b16 %v465, %v461
        %v502 = vpack.c.b16 %v466, %v462
        %v503 = vpack.c.b16 %v467, %v463
        %v504 = vpack.c.b16 %v468, %v464
        %v505 = vpack.c.b16 %v473, %v469
        %v506 = vpack.c.b16 %v474, %v470
        %v507 = vpack.c.b16 %v475, %v471
        %v508 = vpack.c.b16 %v476, %v472
        %541 = vmatprep.subr.bf16.mxu0 %v478
        %542 = vmatpush1.bf16.msra.mxu0 %v477
        %543 = vmatprep.subr.bf16.mxu0 %v482
        %544 = vmatpush1.bf16.msra.mxu0 %v481
        %545 = vmatprep.subr.bf16.mxu0 %v486
        %546 = vmatpush1.bf16.msra.mxu0 %v485
        %547 = vmatprep.subr.bf16.mxu0 %v490
        %548 = vmatpush1.bf16.msra.mxu0 %v489
        %549 = vmatprep.subr.bf16.mxu0 %v494
        %550 = vmatpush1.bf16.msra.mxu0 %v493
        %551 = vmatprep.subr.bf16.mxu0 %v498
        %552 = vmatpush1.bf16.msra.mxu0 %v497
        %553 = vmatprep.subr.bf16.mxu0 %v502
        %554 = vmatpush1.bf16.msra.mxu0 %v501
        %555 = vmatprep.subr.bf16.mxu0 %v506
        %556 = vmatpush1.bf16.msra.mxu0 %v505
        %557 = vmatprep.subr.bf16.mxu0 0
        %558 = vmatpush1.bf16.msra.mxu0 0
        %559 = vmatprep.subr.bf16.mxu0 0
        %560 = vmatpush1.bf16.msra.mxu0 0
        %561 = vmatprep.subr.bf16.mxu0 0
        %562 = vmatpush1.bf16.msra.mxu0 0
        %563 = vmatprep.subr.bf16.mxu0 0
        %564 = vmatpush1.bf16.msra.mxu0 0
        %565 = vmatprep.subr.bf16.mxu0 0
        %566 = vmatpush1.bf16.msra.mxu0 0
        %567 = vmatprep.subr.bf16.mxu0 0
        %568 = vmatpush1.bf16.msra.mxu0 0
        %569 = vmatprep.subr.bf16.mxu0 0
        %570 = vmatpush1.bf16.msra.mxu0 0
        %571 = vmatprep.subr.bf16.mxu0 0
        %572 = vmatpush1.bf16.msra.mxu0 0
        %573 = vmatprep.mubr.bf16.mxu0 0
        %574 = vmatmul.mubr.bf16.gmra.mrb[0].mxu0 %v326
        %v575 = vpop.f32.mrb[0].mxu0
        %v576 = vadd.f32 %v364, %v575
        %v577 = vpop.f32.mrb[0].mxu0
        %v578 = vadd.f32 %v368, %v577
        %v579 = vpop.f32.mrb[0].mxu0
        %v580 = vpop.f32.mrb[0].mxu0
        %581 = vdwg.mxu0
        %582 = vmatprep.subr.bf16.mxu0 %v480
        %583 = vmatpush1.bf16.msra.mxu0 %v479
        %584 = vmatprep.subr.bf16.mxu0 %v484
        %585 = vmatpush1.bf16.msra.mxu0 %v483
        %586 = vmatprep.subr.bf16.mxu0 %v488
        %587 = vmatpush1.bf16.msra.mxu0 %v487
        %588 = vmatprep.subr.bf16.mxu0 %v492
        %589 = vmatpush1.bf16.msra.mxu0 %v491
        %590 = vmatprep.subr.bf16.mxu0 %v496
        %591 = vmatpush1.bf16.msra.mxu0 %v495
        %592 = vmatprep.subr.bf16.mxu0 %v500
        %593 = vmatpush1.bf16.msra.mxu0 %v499
        %594 = vmatprep.subr.bf16.mxu0 %v504
        %595 = vmatpush1.bf16.msra.mxu0 %v503
        %596 = vmatprep.subr.bf16.mxu0 %v508
        %597 = vmatpush1.bf16.msra.mxu0 %v507
        %598 = vmatprep.subr.bf16.mxu0 0
        %599 = vmatpush1.bf16.msra.mxu0 0
        %600 = vmatprep.subr.bf16.mxu0 0
        %601 = vmatpush1.bf16.msra.mxu0 0
        %602 = vmatprep.subr.bf16.mxu0 0
        %603 = vmatpush1.bf16.msra.mxu0 0
        %604 = vmatprep.subr.bf16.mxu0 0
        %605 = vmatpush1.bf16.msra.mxu0 0
        %606 = vmatprep.subr.bf16.mxu0 0
        %607 = vmatpush1.bf16.msra.mxu0 0
        %608 = vmatprep.subr.bf16.mxu0 0
        %609 = vmatpush1.bf16.msra.mxu0 0
        %610 = vmatprep.subr.bf16.mxu0 0
        %611 = vmatpush1.bf16.msra.mxu0 0
        %612 = vmatprep.subr.bf16.mxu0 0
        %613 = vmatpush1.bf16.msra.mxu0 0
        %614 = vmatprep.mubr.bf16.mxu0 0
        %615 = vmatmul.mubr.bf16.gmra.mrb[0].mxu0 %v326
        %v616 = vpop.f32.mrb[0].mxu0
        %v617 = vadd.f32 %v372, %v616
        %v618 = vpop.f32.mrb[0].mxu0
        %v619 = vadd.f32 %v376, %v618
        %v620 = vpop.f32.mrb[0].mxu0
        %v621 = vpop.f32.mrb[0].mxu0
        %622 = vdwg.mxu0
        %v623 = vpack.c.bf16 %v576, %v576
        %v624 = vpack.c.bf16 %v578, %v578
        %v625 = vpack.c.bf16 %v617, %v617
        %v626 = vpack.c.bf16 %v619, %v619
        %v627 = vld [vmem:[#allocation7] sm:$0xff]
        %v628 = vld [vmem:[#allocation7 + $0x8] sm:$0xff]
        %v629 = vld [vmem:[#allocation7 + $0x10] sm:$0xff]
        %v630 = vld [vmem:[#allocation7 + $0x18] sm:$0xff]
        %v631 = vld [vmem:[#allocation7 + $0x20] sm:$0xff]
        %v632 = vld [vmem:[#allocation7 + $0x28] sm:$0xff]
        %v633 = vld [vmem:[#allocation7 + $0x30] sm:$0xff]
        %v634 = vld [vmem:[#allocation7 + $0x38] sm:$0xff]
        %v635 = vld [vmem:[#allocation7 + $0x40] sm:$0xff]
        %v636 = vld [vmem:[#allocation7 + $0x48] sm:$0xff]
        %v637 = vld [vmem:[#allocation7 + $0x50] sm:$0xff]
        %v638 = vld [vmem:[#allocation7 + $0x58] sm:$0xff]
        %v639 = vld [vmem:[#allocation7 + $0x60] sm:$0xff]
        %v640 = vld [vmem:[#allocation7 + $0x68] sm:$0xff]
        %v641 = vld [vmem:[#allocation7 + $0x70] sm:$0xff]
        %v642 = vld [vmem:[#allocation7 + $0x78] sm:$0xff]
        %v643 = vld [vmem:[#allocation7 + $0x80] sm:$0xff]
        %v644 = vld [vmem:[#allocation7 + $0x88] sm:$0xff]
        %v645 = vld [vmem:[#allocation7 + $0x90] sm:$0xff]
        %v646 = vld [vmem:[#allocation7 + $0x98] sm:$0xff]
        %v647 = vld [vmem:[#allocation7 + $0xa0] sm:$0xff]
        %v648 = vld [vmem:[#allocation7 + $0xa8] sm:$0xff]
        %v649 = vld [vmem:[#allocation7 + $0xb0] sm:$0xff]
        %v650 = vld [vmem:[#allocation7 + $0xb8] sm:$0xff]
        %v651 = vld [vmem:[#allocation7 + $0xc0] sm:$0xff]
        %v652 = vld [vmem:[#allocation7 + $0xc8] sm:$0xff]
        %v653 = vld [vmem:[#allocation7 + $0xd0] sm:$0xff]
        %v654 = vld [vmem:[#allocation7 + $0xd8] sm:$0xff]
        %v655 = vld [vmem:[#allocation7 + $0xe0] sm:$0xff]
        %v656 = vld [vmem:[#allocation7 + $0xe8] sm:$0xff]
        %v657 = vld [vmem:[#allocation7 + $0xf0] sm:$0xff]
        %v658 = vld [vmem:[#allocation7 + $0xf8] sm:$0xff]
        %v659 = vld [vmem:[#allocation7 + $0x100] sm:$0xff]
        %v660 = vld [vmem:[#allocation7 + $0x108] sm:$0xff]
        %v661 = vld [vmem:[#allocation7 + $0x110] sm:$0xff]
        %v662 = vld [vmem:[#allocation7 + $0x118] sm:$0xff]
        %v663 = vld [vmem:[#allocation7 + $0x120] sm:$0xff]
        %v664 = vld [vmem:[#allocation7 + $0x128] sm:$0xff]
        %v665 = vld [vmem:[#allocation7 + $0x130] sm:$0xff]
        %v666 = vld [vmem:[#allocation7 + $0x138] sm:$0xff]
        %v667 = vld [vmem:[#allocation7 + $0x140] sm:$0xff]
        %v668 = vld [vmem:[#allocation7 + $0x148] sm:$0xff]
        %v669 = vld [vmem:[#allocation7 + $0x150] sm:$0xff]
        %v670 = vld [vmem:[#allocation7 + $0x158] sm:$0xff]
        %v671 = vld [vmem:[#allocation7 + $0x160] sm:$0xff]
        %v672 = vld [vmem:[#allocation7 + $0x168] sm:$0xff]
        %v673 = vld [vmem:[#allocation7 + $0x170] sm:$0xff]
        %v674 = vld [vmem:[#allocation7 + $0x178] sm:$0xff]
        %v675 = vld [vmem:[#allocation7 + $0x180] sm:$0xff]
        %v676 = vld [vmem:[#allocation7 + $0x188] sm:$0xff]
        %v677 = vld [vmem:[#allocation7 + $0x190] sm:$0xff]
        %v678 = vld [vmem:[#allocation7 + $0x198] sm:$0xff]
        %v679 = vld [vmem:[#allocation7 + $0x1a0] sm:$0xff]
        %v680 = vld [vmem:[#allocation7 + $0x1a8] sm:$0xff]
        %v681 = vld [vmem:[#allocation7 + $0x1b0] sm:$0xff]
        %v682 = vld [vmem:[#allocation7 + $0x1b8] sm:$0xff]
        %v683 = vld [vmem:[#allocation7 + $0x1c0] sm:$0xff]
        %v684 = vld [vmem:[#allocation7 + $0x1c8] sm:$0xff]
        %v685 = vld [vmem:[#allocation7 + $0x1d0] sm:$0xff]
        %v686 = vld [vmem:[#allocation7 + $0x1d8] sm:$0xff]
        %v687 = vld [vmem:[#allocation7 + $0x1e0] sm:$0xff]
        %v688 = vld [vmem:[#allocation7 + $0x1e8] sm:$0xff]
        %v689 = vld [vmem:[#allocation7 + $0x1f0] sm:$0xff]
        %v690 = vld [vmem:[#allocation7 + $0x1f8] sm:$0xff]
        %s691 = scalar_lea.vmem %s5, 1
        %v692 = vld [vmem:[%s691] ss:$4 sm:$0x3]
        %v694 = vlaneseq
        %v695 = vshrl.u32 %v694, 7
        %v696 = vsub.s32 0, %v695
        %v697 = vrot.slane %v692, %v696
        %v698 = vlaneseq
        %v699 = vshrl.u32 %v698, 7
        %v700 = vsub.s32 1, %v699
        %v701 = vrot.slane %v692, %v700
        %v768 = vunpack.c.l.b16 %v627
        %v769 = vunpack.c.h.b16 %v627
        %v770 = vunpack.c.l.b16 %v628
        %v771 = vunpack.c.h.b16 %v628
        %v772 = vunpack.c.l.b16 %v629
        %v773 = vunpack.c.h.b16 %v629
        %v774 = vunpack.c.l.b16 %v630
        %v775 = vunpack.c.h.b16 %v630
        %v776 = vunpack.c.l.b16 %v631
        %v777 = vunpack.c.h.b16 %v631
        %v778 = vunpack.c.l.b16 %v632
        %v779 = vunpack.c.h.b16 %v632
        %v780 = vunpack.c.l.b16 %v633
        %v781 = vunpack.c.h.b16 %v633
        %v782 = vunpack.c.l.b16 %v634
        %v783 = vunpack.c.h.b16 %v634
        %v784 = vunpack.c.l.b16 %v635
        %v785 = vunpack.c.h.b16 %v635
        %v786 = vunpack.c.l.b16 %v636
        %v787 = vunpack.c.h.b16 %v636
        %v788 = vunpack.c.l.b16 %v637
        %v789 = vunpack.c.h.b16 %v637
        %v790 = vunpack.c.l.b16 %v638
        %v791 = vunpack.c.h.b16 %v638
        %v792 = vunpack.c.l.b16 %v639
        %v793 = vunpack.c.h.b16 %v639
        %v794 = vunpack.c.l.b16 %v640
        %v795 = vunpack.c.h.b16 %v640
        %v796 = vunpack.c.l.b16 %v641
        %v797 = vunpack.c.h.b16 %v641
        %v798 = vunpack.c.l.b16 %v642
        %v799 = vunpack.c.h.b16 %v642
        %v800 = vunpack.c.l.b16 %v643
        %v801 = vunpack.c.h.b16 %v643
        %v802 = vunpack.c.l.b16 %v644
        %v803 = vunpack.c.h.b16 %v644
        %v804 = vunpack.c.l.b16 %v645
        %v805 = vunpack.c.h.b16 %v645
        %v806 = vunpack.c.l.b16 %v646
        %v807 = vunpack.c.h.b16 %v646
        %v808 = vunpack.c.l.b16 %v647
        %v809 = vunpack.c.h.b16 %v647
        %v810 = vunpack.c.l.b16 %v648
        %v811 = vunpack.c.h.b16 %v648
        %v812 = vunpack.c.l.b16 %v649
        %v813 = vunpack.c.h.b16 %v649
        %v814 = vunpack.c.l.b16 %v650
        %v815 = vunpack.c.h.b16 %v650
        %v816 = vunpack.c.l.b16 %v651
        %v817 = vunpack.c.h.b16 %v651
        %v818 = vunpack.c.l.b16 %v652
        %v819 = vunpack.c.h.b16 %v652
        %v820 = vunpack.c.l.b16 %v653
        %v821 = vunpack.c.h.b16 %v653
        %v822 = vunpack.c.l.b16 %v654
        %v823 = vunpack.c.h.b16 %v654
        %v824 = vunpack.c.l.b16 %v655
        %v825 = vunpack.c.h.b16 %v655
        %v826 = vunpack.c.l.b16 %v656
        %v827 = vunpack.c.h.b16 %v656
        %v828 = vunpack.c.l.b16 %v657
        %v829 = vunpack.c.h.b16 %v657
        %v830 = vunpack.c.l.b16 %v658
        %v831 = vunpack.c.h.b16 %v658
        %v832 = vunpack.c.l.b16 %v659
        %v833 = vunpack.c.h.b16 %v659
        %v834 = vunpack.c.l.b16 %v660
        %v835 = vunpack.c.h.b16 %v660
        %v836 = vunpack.c.l.b16 %v661
        %v837 = vunpack.c.h.b16 %v661
        %v838 = vunpack.c.l.b16 %v662
        %v839 = vunpack.c.h.b16 %v662
        %v840 = vunpack.c.l.b16 %v663
        %v841 = vunpack.c.h.b16 %v663
        %v842 = vunpack.c.l.b16 %v664
        %v843 = vunpack.c.h.b16 %v664
        %v844 = vunpack.c.l.b16 %v665
        %v845 = vunpack.c.h.b16 %v665
        %v846 = vunpack.c.l.b16 %v666
        %v847 = vunpack.c.h.b16 %v666
        %v848 = vunpack.c.l.b16 %v667
        %v849 = vunpack.c.h.b16 %v667
        %v850 = vunpack.c.l.b16 %v668
        %v851 = vunpack.c.h.b16 %v668
        %v852 = vunpack.c.l.b16 %v669
        %v853 = vunpack.c.h.b16 %v669
        %v854 = vunpack.c.l.b16 %v670
        %v855 = vunpack.c.h.b16 %v670
        %v856 = vunpack.c.l.b16 %v671
        %v857 = vunpack.c.h.b16 %v671
        %v858 = vunpack.c.l.b16 %v672
        %v859 = vunpack.c.h.b16 %v672
        %v860 = vunpack.c.l.b16 %v673
        %v861 = vunpack.c.h.b16 %v673
        %v862 = vunpack.c.l.b16 %v674
        %v863 = vunpack.c.h.b16 %v674
        %v864 = vunpack.c.l.b16 %v675
        %v865 = vunpack.c.h.b16 %v675
        %v866 = vunpack.c.l.b16 %v676
        %v867 = vunpack.c.h.b16 %v676
        %v868 = vunpack.c.l.b16 %v677
        %v869 = vunpack.c.h.b16 %v677
        %v870 = vunpack.c.l.b16 %v678
        %v871 = vunpack.c.h.b16 %v678
        %v872 = vunpack.c.l.b16 %v679
        %v873 = vunpack.c.h.b16 %v679
        %v874 = vunpack.c.l.b16 %v680
        %v875 = vunpack.c.h.b16 %v680
        %v876 = vunpack.c.l.b16 %v681
        %v877 = vunpack.c.h.b16 %v681
        %v878 = vunpack.c.l.b16 %v682
        %v879 = vunpack.c.h.b16 %v682
        %v880 = vunpack.c.l.b16 %v683
        %v881 = vunpack.c.h.b16 %v683
        %v882 = vunpack.c.l.b16 %v684
        %v883 = vunpack.c.h.b16 %v684
        %v884 = vunpack.c.l.b16 %v685
        %v885 = vunpack.c.h.b16 %v685
        %v886 = vunpack.c.l.b16 %v686
        %v887 = vunpack.c.h.b16 %v686
        %v888 = vunpack.c.l.b16 %v687
        %v889 = vunpack.c.h.b16 %v687
        %v890 = vunpack.c.l.b16 %v688
        %v891 = vunpack.c.h.b16 %v688
        %v892 = vunpack.c.l.b16 %v689
        %v893 = vunpack.c.h.b16 %v689
        %v894 = vunpack.c.l.b16 %v690
        %v895 = vunpack.c.h.b16 %v690
        %v896 = vpack.c.b16 %v770, %v768
        %v897 = vpack.c.b16 %v771, %v769
        %v898 = vpack.c.b16 %v774, %v772
        %v899 = vpack.c.b16 %v775, %v773
        %v900 = vpack.c.b16 %v778, %v776
        %v901 = vpack.c.b16 %v779, %v777
        %v902 = vpack.c.b16 %v782, %v780
        %v903 = vpack.c.b16 %v783, %v781
        %v904 = vpack.c.b16 %v786, %v784
        %v905 = vpack.c.b16 %v787, %v785
        %v906 = vpack.c.b16 %v790, %v788
        %v907 = vpack.c.b16 %v791, %v789
        %v908 = vpack.c.b16 %v794, %v792
        %v909 = vpack.c.b16 %v795, %v793
        %v910 = vpack.c.b16 %v798, %v796
        %v911 = vpack.c.b16 %v799, %v797
        %v912 = vpack.c.b16 %v802, %v800
        %v913 = vpack.c.b16 %v803, %v801
        %v914 = vpack.c.b16 %v806, %v804
        %v915 = vpack.c.b16 %v807, %v805
        %v916 = vpack.c.b16 %v810, %v808
        %v917 = vpack.c.b16 %v811, %v809
        %v918 = vpack.c.b16 %v814, %v812
        %v919 = vpack.c.b16 %v815, %v813
        %v920 = vpack.c.b16 %v818, %v816
        %v921 = vpack.c.b16 %v819, %v817
        %v922 = vpack.c.b16 %v822, %v820
        %v923 = vpack.c.b16 %v823, %v821
        %v924 = vpack.c.b16 %v826, %v824
        %v925 = vpack.c.b16 %v827, %v825
        %v926 = vpack.c.b16 %v830, %v828
        %v927 = vpack.c.b16 %v831, %v829
        %v928 = vpack.c.b16 %v834, %v832
        %v929 = vpack.c.b16 %v835, %v833
        %v930 = vpack.c.b16 %v838, %v836
        %v931 = vpack.c.b16 %v839, %v837
        %v932 = vpack.c.b16 %v842, %v840
        %v933 = vpack.c.b16 %v843, %v841
        %v934 = vpack.c.b16 %v846, %v844
        %v935 = vpack.c.b16 %v847, %v845
        %v936 = vpack.c.b16 %v850, %v848
        %v937 = vpack.c.b16 %v851, %v849
        %v938 = vpack.c.b16 %v854, %v852
        %v939 = vpack.c.b16 %v855, %v853
        %v940 = vpack.c.b16 %v858, %v856
        %v941 = vpack.c.b16 %v859, %v857
        %v942 = vpack.c.b16 %v862, %v860
        %v943 = vpack.c.b16 %v863, %v861
        %v944 = vpack.c.b16 %v866, %v864
        %v945 = vpack.c.b16 %v867, %v865
        %v946 = vpack.c.b16 %v870, %v868
        %v947 = vpack.c.b16 %v871, %v869
        %v948 = vpack.c.b16 %v874, %v872
        %v949 = vpack.c.b16 %v875, %v873
        %v950 = vpack.c.b16 %v878, %v876
        %v951 = vpack.c.b16 %v879, %v877
        %v952 = vpack.c.b16 %v882, %v880
        %v953 = vpack.c.b16 %v883, %v881
        %v954 = vpack.c.b16 %v886, %v884
        %v955 = vpack.c.b16 %v887, %v885
        %v956 = vpack.c.b16 %v890, %v888
        %v957 = vpack.c.b16 %v891, %v889
        %v958 = vpack.c.b16 %v894, %v892
        %v959 = vpack.c.b16 %v895, %v893
        %1024 = vmatprep.subr.bf16.mxu0 %v897
        %1025 = vmatpush1.bf16.msra.mxu0 %v896
        %1026 = vmatprep.subr.bf16.mxu0 %v899
        %1027 = vmatpush1.bf16.msra.mxu0 %v898
        %1028 = vmatprep.subr.bf16.mxu0 %v901
        %1029 = vmatpush1.bf16.msra.mxu0 %v900
        %1030 = vmatprep.subr.bf16.mxu0 %v903
        %1031 = vmatpush1.bf16.msra.mxu0 %v902
        %1032 = vmatprep.subr.bf16.mxu0 %v905
        %1033 = vmatpush1.bf16.msra.mxu0 %v904
        %1034 = vmatprep.subr.bf16.mxu0 %v907
        %1035 = vmatpush1.bf16.msra.mxu0 %v906
        %1036 = vmatprep.subr.bf16.mxu0 %v909
        %1037 = vmatpush1.bf16.msra.mxu0 %v908
        %1038 = vmatprep.subr.bf16.mxu0 %v911
        %1039 = vmatpush1.bf16.msra.mxu0 %v910
        %1040 = vmatprep.subr.bf16.mxu0 %v913
        %1041 = vmatpush1.bf16.msra.mxu0 %v912
        %1042 = vmatprep.subr.bf16.mxu0 %v915
        %1043 = vmatpush1.bf16.msra.mxu0 %v914
        %1044 = vmatprep.subr.bf16.mxu0 %v917
        %1045 = vmatpush1.bf16.msra.mxu0 %v916
        %1046 = vmatprep.subr.bf16.mxu0 %v919
        %1047 = vmatpush1.bf16.msra.mxu0 %v918
        %1048 = vmatprep.subr.bf16.mxu0 %v921
        %1049 = vmatpush1.bf16.msra.mxu0 %v920
        %1050 = vmatprep.subr.bf16.mxu0 %v923
        %1051 = vmatpush1.bf16.msra.mxu0 %v922
        %1052 = vmatprep.subr.bf16.mxu0 %v925
        %1053 = vmatpush1.bf16.msra.mxu0 %v924
        %1054 = vmatprep.subr.bf16.mxu0 %v927
        %1055 = vmatpush1.bf16.msra.mxu0 %v926
        %1056 = vmatprep.mubr.bf16.mxu0 %v624
        %1057 = vmatmul.mubr.bf16.gmra.mrb[0].mxu0 %v623
        %v1058 = vpop.f32.mrb[0].mxu0
        %v1059 = vadd.f32 %v697, %v1058
        %v1060 = vpop.f32.mrb[0].mxu0
        %v1061 = vadd.f32 %v701, %v1060
        %v1062 = vpop.f32.mrb[0].mxu0
        %v1063 = vpop.f32.mrb[0].mxu0
        %1064 = vdwg.mxu0
        %1065 = vmatprep.subr.bf16.mxu0 %v929
        %1066 = vmatpush1.bf16.msra.mxu0 %v928
        %1067 = vmatprep.subr.bf16.mxu0 %v931
        %1068 = vmatpush1.bf16.msra.mxu0 %v930
        %1069 = vmatprep.subr.bf16.mxu0 %v933
        %1070 = vmatpush1.bf16.msra.mxu0 %v932
        %1071 = vmatprep.subr.bf16.mxu0 %v935
        %1072 = vmatpush1.bf16.msra.mxu0 %v934
        %1073 = vmatprep.subr.bf16.mxu0 %v937
        %1074 = vmatpush1.bf16.msra.mxu0 %v936
        %1075 = vmatprep.subr.bf16.mxu0 %v939
        %1076 = vmatpush1.bf16.msra.mxu0 %v938
        %1077 = vmatprep.subr.bf16.mxu0 %v941
        %1078 = vmatpush1.bf16.msra.mxu0 %v940
        %1079 = vmatprep.subr.bf16.mxu0 %v943
        %1080 = vmatpush1.bf16.msra.mxu0 %v942
        %1081 = vmatprep.subr.bf16.mxu0 %v945
        %1082 = vmatpush1.bf16.msra.mxu0 %v944
        %1083 = vmatprep.subr.bf16.mxu0 %v947
        %1084 = vmatpush1.bf16.msra.mxu0 %v946
        %1085 = vmatprep.subr.bf16.mxu0 %v949
        %1086 = vmatpush1.bf16.msra.mxu0 %v948
        %1087 = vmatprep.subr.bf16.mxu0 %v951
        %1088 = vmatpush1.bf16.msra.mxu0 %v950
        %1089 = vmatprep.subr.bf16.mxu0 %v953
        %1090 = vmatpush1.bf16.msra.mxu0 %v952
        %1091 = vmatprep.subr.bf16.mxu0 %v955
        %1092 = vmatpush1.bf16.msra.mxu0 %v954
        %1093 = vmatprep.subr.bf16.mxu0 %v957
        %1094 = vmatpush1.bf16.msra.mxu0 %v956
        %1095 = vmatprep.subr.bf16.mxu0 %v959
        %1096 = vmatpush1.bf16.msra.mxu0 %v958
        %1097 = vmatprep.mubr.bf16.mxu0 %v626
        %1098 = vmatmul.mubr.bf16.gmra.mrb[0].mxu0 %v625
        %v1099 = vpop.f32.mrb[0].mxu0
        %v1100 = vadd.f32 %v1059, %v1099
        %v1101 = vpop.f32.mrb[0].mxu0
        %v1102 = vadd.f32 %v1061, %v1101
        %v1103 = vpop.f32.mrb[0].mxu0
        %v1104 = vpop.f32.mrb[0].mxu0
        %1105 = vdwg.mxu0
        %v1106 = vtanh.pop %v1100
        %v1107 = vtanh.pop %v1102
        %v1108 = vpack.c.bf16 %v1106, %v1106
        %v1109 = vpack.c.bf16 %v1107, %v1107
        %v1110 = vld [vmem:[#allocation8] sm:$0xff]
        %v1111 = vld [vmem:[#allocation8 + $0x8] sm:$0xff]
        %v1112 = vld [vmem:[#allocation8 + $0x10] sm:$0xff]
        %v1113 = vld [vmem:[#allocation8 + $0x18] sm:$0xff]
        %v1114 = vld [vmem:[#allocation8 + $0x20] sm:$0xff]
        %v1115 = vld [vmem:[#allocation8 + $0x28] sm:$0xff]
        %v1116 = vld [vmem:[#allocation8 + $0x30] sm:$0xff]
        %v1117 = vld [vmem:[#allocation8 + $0x38] sm:$0xff]
        %v1118 = vld [vmem:[#allocation8 + $0x40] sm:$0xff]
        %v1119 = vld [vmem:[#allocation8 + $0x48] sm:$0xff]
        %v1120 = vld [vmem:[#allocation8 + $0x50] sm:$0xff]
        %v1121 = vld [vmem:[#allocation8 + $0x58] sm:$0xff]
        %v1122 = vld [vmem:[#allocation8 + $0x60] sm:$0xff]
        %v1123 = vld [vmem:[#allocation8 + $0x68] sm:$0xff]
        %v1124 = vld [vmem:[#allocation8 + $0x70] sm:$0xff]
        %v1125 = vld [vmem:[#allocation8 + $0x78] sm:$0xff]
        %v1126 = vld [vmem:[#allocation8 + $0x80] sm:$0xff]
        %v1127 = vld [vmem:[#allocation8 + $0x88] sm:$0xff]
        %v1128 = vld [vmem:[#allocation8 + $0x90] sm:$0xff]
        %v1129 = vld [vmem:[#allocation8 + $0x98] sm:$0xff]
        %v1130 = vld [vmem:[#allocation8 + $0xa0] sm:$0xff]
        %v1131 = vld [vmem:[#allocation8 + $0xa8] sm:$0xff]
        %v1132 = vld [vmem:[#allocation8 + $0xb0] sm:$0xff]
        %v1133 = vld [vmem:[#allocation8 + $0xb8] sm:$0xff]
        %v1134 = vld [vmem:[#allocation8 + $0xc0] sm:$0xff]
        %v1135 = vld [vmem:[#allocation8 + $0xc8] sm:$0xff]
        %v1136 = vld [vmem:[#allocation8 + $0xd0] sm:$0xff]
        %v1137 = vld [vmem:[#allocation8 + $0xd8] sm:$0xff]
        %v1138 = vld [vmem:[#allocation8 + $0xe0] sm:$0xff]
        %v1139 = vld [vmem:[#allocation8 + $0xe8] sm:$0xff]
        %v1140 = vld [vmem:[#allocation8 + $0xf0] sm:$0xff]
        %v1141 = vld [vmem:[#allocation8 + $0xf8] sm:$0xff]
        %s1142 = scalar_lea.vmem %s5, 2
        %v1143 = vld [vmem:[%s1142] ss:$4 sm:$0x3]
        %v1145 = vlaneseq
        %v1146 = vshrl.u32 %v1145, 7
        %v1147 = vsub.s32 0, %v1146
        %v1148 = vrot.slane %v1143, %v1147
        %v1149 = vlaneseq
        %v1150 = vshrl.u32 %v1149, 7
        %v1151 = vsub.s32 1, %v1150
        %v1152 = vrot.slane %v1143, %v1151
        %v1187 = vunpack.c.l.b16 %v1110
        %v1188 = vunpack.c.h.b16 %v1110
        %v1189 = vunpack.c.l.b16 %v1111
        %v1190 = vunpack.c.h.b16 %v1111
        %v1191 = vunpack.c.l.b16 %v1112
        %v1192 = vunpack.c.h.b16 %v1112
        %v1193 = vunpack.c.l.b16 %v1113
        %v1194 = vunpack.c.h.b16 %v1113
        %v1195 = vunpack.c.l.b16 %v1114
        %v1196 = vunpack.c.h.b16 %v1114
        %v1197 = vunpack.c.l.b16 %v1115
        %v1198 = vunpack.c.h.b16 %v1115
        %v1199 = vunpack.c.l.b16 %v1116
        %v1200 = vunpack.c.h.b16 %v1116
        %v1201 = vunpack.c.l.b16 %v1117
        %v1202 = vunpack.c.h.b16 %v1117
        %v1203 = vunpack.c.l.b16 %v1118
        %v1204 = vunpack.c.h.b16 %v1118
        %v1205 = vunpack.c.l.b16 %v1119
        %v1206 = vunpack.c.h.b16 %v1119
        %v1207 = vunpack.c.l.b16 %v1120
        %v1208 = vunpack.c.h.b16 %v1120
        %v1209 = vunpack.c.l.b16 %v1121
        %v1210 = vunpack.c.h.b16 %v1121
        %v1211 = vunpack.c.l.b16 %v1122
        %v1212 = vunpack.c.h.b16 %v1122
        %v1213 = vunpack.c.l.b16 %v1123
        %v1214 = vunpack.c.h.b16 %v1123
        %v1215 = vunpack.c.l.b16 %v1124
        %v1216 = vunpack.c.h.b16 %v1124
        %v1217 = vunpack.c.l.b16 %v1125
        %v1218 = vunpack.c.h.b16 %v1125
        %v1219 = vunpack.c.l.b16 %v1126
        %v1220 = vunpack.c.h.b16 %v1126
        %v1221 = vunpack.c.l.b16 %v1127
        %v1222 = vunpack.c.h.b16 %v1127
        %v1223 = vunpack.c.l.b16 %v1128
        %v1224 = vunpack.c.h.b16 %v1128
        %v1225 = vunpack.c.l.b16 %v1129
        %v1226 = vunpack.c.h.b16 %v1129
        %v1227 = vunpack.c.l.b16 %v1130
        %v1228 = vunpack.c.h.b16 %v1130
        %v1229 = vunpack.c.l.b16 %v1131
        %v1230 = vunpack.c.h.b16 %v1131
        %v1231 = vunpack.c.l.b16 %v1132
        %v1232 = vunpack.c.h.b16 %v1132
        %v1233 = vunpack.c.l.b16 %v1133
        %v1234 = vunpack.c.h.b16 %v1133
        %v1235 = vunpack.c.l.b16 %v1134
        %v1236 = vunpack.c.h.b16 %v1134
        %v1237 = vunpack.c.l.b16 %v1135
        %v1238 = vunpack.c.h.b16 %v1135
        %v1239 = vunpack.c.l.b16 %v1136
        %v1240 = vunpack.c.h.b16 %v1136
        %v1241 = vunpack.c.l.b16 %v1137
        %v1242 = vunpack.c.h.b16 %v1137
        %v1243 = vunpack.c.l.b16 %v1138
        %v1244 = vunpack.c.h.b16 %v1138
        %v1245 = vunpack.c.l.b16 %v1139
        %v1246 = vunpack.c.h.b16 %v1139
        %v1247 = vunpack.c.l.b16 %v1140
        %v1248 = vunpack.c.h.b16 %v1140
        %v1249 = vunpack.c.l.b16 %v1141
        %v1250 = vunpack.c.h.b16 %v1141
        %v1251 = vpack.c.b16 %v1189, %v1187
        %v1252 = vpack.c.b16 %v1190, %v1188
        %v1253 = vpack.c.b16 %v1193, %v1191
        %v1254 = vpack.c.b16 %v1194, %v1192
        %v1255 = vpack.c.b16 %v1197, %v1195
        %v1256 = vpack.c.b16 %v1198, %v1196
        %v1257 = vpack.c.b16 %v1201, %v1199
        %v1258 = vpack.c.b16 %v1202, %v1200
        %v1259 = vpack.c.b16 %v1205, %v1203
        %v1260 = vpack.c.b16 %v1206, %v1204
        %v1261 = vpack.c.b16 %v1209, %v1207
        %v1262 = vpack.c.b16 %v1210, %v1208
        %v1263 = vpack.c.b16 %v1213, %v1211
        %v1264 = vpack.c.b16 %v1214, %v1212
        %v1265 = vpack.c.b16 %v1217, %v1215
        %v1266 = vpack.c.b16 %v1218, %v1216
        %v1267 = vpack.c.b16 %v1221, %v1219
        %v1268 = vpack.c.b16 %v1222, %v1220
        %v1269 = vpack.c.b16 %v1225, %v1223
        %v1270 = vpack.c.b16 %v1226, %v1224
        %v1271 = vpack.c.b16 %v1229, %v1227
        %v1272 = vpack.c.b16 %v1230, %v1228
        %v1273 = vpack.c.b16 %v1233, %v1231
        %v1274 = vpack.c.b16 %v1234, %v1232
        %v1275 = vpack.c.b16 %v1237, %v1235
        %v1276 = vpack.c.b16 %v1238, %v1236
        %v1277 = vpack.c.b16 %v1241, %v1239
        %v1278 = vpack.c.b16 %v1242, %v1240
        %v1279 = vpack.c.b16 %v1245, %v1243
        %v1280 = vpack.c.b16 %v1246, %v1244
        %v1281 = vpack.c.b16 %v1249, %v1247
        %v1282 = vpack.c.b16 %v1250, %v1248
        %1315 = vmatprep.subr.bf16.mxu0 %v1252
        %1316 = vmatpush1.bf16.msra.mxu0 %v1251
        %1317 = vmatprep.subr.bf16.mxu0 %v1254
        %1318 = vmatpush1.bf16.msra.mxu0 %v1253
        %1319 = vmatprep.subr.bf16.mxu0 %v1256
        %1320 = vmatpush1.bf16.msra.mxu0 %v1255
        %1321 = vmatprep.subr.bf16.mxu0 %v1258
        %1322 = vmatpush1.bf16.msra.mxu0 %v1257
        %1323 = vmatprep.subr.bf16.mxu0 %v1260
        %1324 = vmatpush1.bf16.msra.mxu0 %v1259
        %1325 = vmatprep.subr.bf16.mxu0 %v1262
        %1326 = vmatpush1.bf16.msra.mxu0 %v1261
        %1327 = vmatprep.subr.bf16.mxu0 %v1264
        %1328 = vmatpush1.bf16.msra.mxu0 %v1263
        %1329 = vmatprep.subr.bf16.mxu0 %v1266
        %1330 = vmatpush1.bf16.msra.mxu0 %v1265
        %1331 = vmatprep.subr.bf16.mxu0 %v1268
        %1332 = vmatpush1.bf16.msra.mxu0 %v1267
        %1333 = vmatprep.subr.bf16.mxu0 %v1270
        %1334 = vmatpush1.bf16.msra.mxu0 %v1269
        %1335 = vmatprep.subr.bf16.mxu0 %v1272
        %1336 = vmatpush1.bf16.msra.mxu0 %v1271
        %1337 = vmatprep.subr.bf16.mxu0 %v1274
        %1338 = vmatpush1.bf16.msra.mxu0 %v1273
        %1339 = vmatprep.subr.bf16.mxu0 %v1276
        %1340 = vmatpush1.bf16.msra.mxu0 %v1275
        %1341 = vmatprep.subr.bf16.mxu0 %v1278
        %1342 = vmatpush1.bf16.msra.mxu0 %v1277
        %1343 = vmatprep.subr.bf16.mxu0 %v1280
        %1344 = vmatpush1.bf16.msra.mxu0 %v1279
        %1345 = vmatprep.subr.bf16.mxu0 %v1282
        %1346 = vmatpush1.bf16.msra.mxu0 %v1281
        %1347 = vmatprep.mubr.bf16.mxu0 %v1109
        %1348 = vmatmul.mubr.bf16.gmra.mrb[0].mxu0 %v1108
        %v1349 = vpop.f32.mrb[0].mxu0
        %v1350 = vadd.f32 %v1148, %v1349
        %v1351 = vpop.f32.mrb[0].mxu0
        %v1352 = vadd.f32 %v1152, %v1351
        %v1353 = vpop.f32.mrb[0].mxu0
        %v1354 = vpop.f32.mrb[0].mxu0
        %1355 = vdwg.mxu0
        %v1356 = vmax.f32 %v1350, %v1352
        %1357 = vmax.xlane.f32.xlu0 %v1356
        %v1358 = vpop.xlane.xlu0 %1357
        %v1359 = vsub.f32 %v1350, %v1358
        %v1360 = vsub.f32 %v1352, %v1358
        %v1361 = vmul.f32 %v1359, 1.442695
        %v1362 = vpow.pop %v1361
        %v1363 = vmul.f32 %v1360, 1.442695
        %v1364 = vpow.pop %v1363
        %v1365 = vpack.c.bf16 %v1362, %v1362
        %v1366 = vpack.c.bf16 %v1364, %v1364
        %v1367 = vunpack.c.l.bf16 %v1365
        %v1368 = vunpack.c.l.bf16 %v1366
        %v1369 = vsub.f32 %v1362, %v1367
        %v1370 = vsub.f32 %v1364, %v1368
        %v1371 = vpack.c.bf16 %v1369, %v1369
        %v1372 = vpack.c.bf16 %v1370, %v1370
        %v1373 = vld [vmem:[#allocation10] sm:$0xff]
        %v1374 = vld [vmem:[#allocation10 + $0x8] sm:$0xff]
        %v1375 = vld [vmem:[#allocation10 + $0x10] sm:$0xff]
        %v1376 = vld [vmem:[#allocation10 + $0x18] sm:$0xff]
        %v1377 = vld [vmem:[#allocation10 + $0x20] sm:$0xff]
        %v1378 = vld [vmem:[#allocation10 + $0x28] sm:$0xff]
        %v1379 = vld [vmem:[#allocation10 + $0x30] sm:$0xff]
        %v1380 = vld [vmem:[#allocation10 + $0x38] sm:$0xff]
        %v1381 = vld [vmem:[#allocation10 + $0x40] sm:$0xff]
        %v1382 = vld [vmem:[#allocation10 + $0x48] sm:$0xff]
        %v1383 = vld [vmem:[#allocation10 + $0x50] sm:$0xff]
        %v1384 = vld [vmem:[#allocation10 + $0x58] sm:$0xff]
        %v1385 = vld [vmem:[#allocation10 + $0x60] sm:$0xff]
        %v1386 = vld [vmem:[#allocation10 + $0x68] sm:$0xff]
        %v1387 = vld [vmem:[#allocation10 + $0x70] sm:$0xff]
        %v1388 = vld [vmem:[#allocation10 + $0x78] sm:$0xff]
        %v1389 = vld [vmem:[#allocation10 + $0x80] sm:$0xff]
        %v1390 = vld [vmem:[#allocation10 + $0x88] sm:$0xff]
        %v1391 = vld [vmem:[#allocation10 + $0x90] sm:$0xff]
        %v1392 = vld [vmem:[#allocation10 + $0x98] sm:$0xff]
        %v1393 = vld [vmem:[#allocation10 + $0xa0] sm:$0xff]
        %v1394 = vld [vmem:[#allocation10 + $0xa8] sm:$0xff]
        %v1395 = vld [vmem:[#allocation10 + $0xb0] sm:$0xff]
        %v1396 = vld [vmem:[#allocation10 + $0xb8] sm:$0xff]
        %v1397 = vld [vmem:[#allocation10 + $0xc0] sm:$0xff]
        %v1398 = vld [vmem:[#allocation10 + $0xc8] sm:$0xff]
        %v1399 = vld [vmem:[#allocation10 + $0xd0] sm:$0xff]
        %v1400 = vld [vmem:[#allocation10 + $0xd8] sm:$0xff]
        %v1401 = vld [vmem:[#allocation10 + $0xe0] sm:$0xff]
        %v1402 = vld [vmem:[#allocation10 + $0xe8] sm:$0xff]
        %v1403 = vld [vmem:[#allocation10 + $0xf0] sm:$0xff]
        %v1404 = vld [vmem:[#allocation10 + $0xf8] sm:$0xff]
        %v1437 = vunpack.c.l.b16 %v1373
        %v1438 = vunpack.c.h.b16 %v1373
        %v1439 = vunpack.c.l.b16 %v1374
        %v1440 = vunpack.c.h.b16 %v1374
        %v1441 = vunpack.c.l.b16 %v1375
        %v1442 = vunpack.c.h.b16 %v1375
        %v1443 = vunpack.c.l.b16 %v1376
        %v1444 = vunpack.c.h.b16 %v1376
        %v1445 = vunpack.c.l.b16 %v1377
        %v1446 = vunpack.c.h.b16 %v1377
        %v1447 = vunpack.c.l.b16 %v1378
        %v1448 = vunpack.c.h.b16 %v1378
        %v1449 = vunpack.c.l.b16 %v1379
        %v1450 = vunpack.c.h.b16 %v1379
        %v1451 = vunpack.c.l.b16 %v1380
        %v1452 = vunpack.c.h.b16 %v1380
        %v1453 = vunpack.c.l.b16 %v1381
        %v1454 = vunpack.c.h.b16 %v1381
        %v1455 = vunpack.c.l.b16 %v1382
        %v1456 = vunpack.c.h.b16 %v1382
        %v1457 = vunpack.c.l.b16 %v1383
        %v1458 = vunpack.c.h.b16 %v1383
        %v1459 = vunpack.c.l.b16 %v1384
        %v1460 = vunpack.c.h.b16 %v1384
        %v1461 = vunpack.c.l.b16 %v1385
        %v1462 = vunpack.c.h.b16 %v1385
        %v1463 = vunpack.c.l.b16 %v1386
        %v1464 = vunpack.c.h.b16 %v1386
        %v1465 = vunpack.c.l.b16 %v1387
        %v1466 = vunpack.c.h.b16 %v1387
        %v1467 = vunpack.c.l.b16 %v1388
        %v1468 = vunpack.c.h.b16 %v1388
        %v1469 = vunpack.c.l.b16 %v1389
        %v1470 = vunpack.c.h.b16 %v1389
        %v1471 = vunpack.c.l.b16 %v1390
        %v1472 = vunpack.c.h.b16 %v1390
        %v1473 = vunpack.c.l.b16 %v1391
        %v1474 = vunpack.c.h.b16 %v1391
        %v1475 = vunpack.c.l.b16 %v1392
        %v1476 = vunpack.c.h.b16 %v1392
        %v1477 = vunpack.c.l.b16 %v1393
        %v1478 = vunpack.c.h.b16 %v1393
        %v1479 = vunpack.c.l.b16 %v1394
        %v1480 = vunpack.c.h.b16 %v1394
        %v1481 = vunpack.c.l.b16 %v1395
        %v1482 = vunpack.c.h.b16 %v1395
        %v1483 = vunpack.c.l.b16 %v1396
        %v1484 = vunpack.c.h.b16 %v1396
        %v1485 = vunpack.c.l.b16 %v1397
        %v1486 = vunpack.c.h.b16 %v1397
        %v1487 = vunpack.c.l.b16 %v1398
        %v1488 = vunpack.c.h.b16 %v1398
        %v1489 = vunpack.c.l.b16 %v1399
        %v1490 = vunpack.c.h.b16 %v1399
        %v1491 = vunpack.c.l.b16 %v1400
        %v1492 = vunpack.c.h.b16 %v1400
        %v1493 = vunpack.c.l.b16 %v1401
        %v1494 = vunpack.c.h.b16 %v1401
        %v1495 = vunpack.c.l.b16 %v1402
        %v1496 = vunpack.c.h.b16 %v1402
        %v1497 = vunpack.c.l.b16 %v1403
        %v1498 = vunpack.c.h.b16 %v1403
        %v1499 = vunpack.c.l.b16 %v1404
        %v1500 = vunpack.c.h.b16 %v1404
        %v1501 = vpack.c.b16 %v1439, %v1437
        %v1502 = vpack.c.b16 %v1440, %v1438
        %v1503 = vpack.c.b16 %v1443, %v1441
        %v1504 = vpack.c.b16 %v1444, %v1442
        %v1505 = vpack.c.b16 %v1447, %v1445
        %v1506 = vpack.c.b16 %v1448, %v1446
        %v1507 = vpack.c.b16 %v1451, %v1449
        %v1508 = vpack.c.b16 %v1452, %v1450
        %v1509 = vpack.c.b16 %v1455, %v1453
        %v1510 = vpack.c.b16 %v1456, %v1454
        %v1511 = vpack.c.b16 %v1459, %v1457
        %v1512 = vpack.c.b16 %v1460, %v1458
        %v1513 = vpack.c.b16 %v1463, %v1461
        %v1514 = vpack.c.b16 %v1464, %v1462
        %v1515 = vpack.c.b16 %v1467, %v1465
        %v1516 = vpack.c.b16 %v1468, %v1466
        %v1517 = vpack.c.b16 %v1471, %v1469
        %v1518 = vpack.c.b16 %v1472, %v1470
        %v1519 = vpack.c.b16 %v1475, %v1473
        %v1520 = vpack.c.b16 %v1476, %v1474
        %v1521 = vpack.c.b16 %v1479, %v1477
        %v1522 = vpack.c.b16 %v1480, %v1478
        %v1523 = vpack.c.b16 %v1483, %v1481
        %v1524 = vpack.c.b16 %v1484, %v1482
        %v1525 = vpack.c.b16 %v1487, %v1485
        %v1526 = vpack.c.b16 %v1488, %v1486
        %v1527 = vpack.c.b16 %v1491, %v1489
        %v1528 = vpack.c.b16 %v1492, %v1490
        %v1529 = vpack.c.b16 %v1495, %v1493
        %v1530 = vpack.c.b16 %v1496, %v1494
        %v1531 = vpack.c.b16 %v1499, %v1497
        %v1532 = vpack.c.b16 %v1500, %v1498
        %1565 = vmatprep.subr.bf16.mxu0 %v1502
        %1566 = vmatpush1.bf16.msra.mxu0 %v1501
        %1567 = vmatprep.subr.bf16.mxu0 %v1504
        %1568 = vmatpush1.bf16.msra.mxu0 %v1503
        %1569 = vmatprep.subr.bf16.mxu0 %v1506
        %1570 = vmatpush1.bf16.msra.mxu0 %v1505
        %1571 = vmatprep.subr.bf16.mxu0 %v1508
        %1572 = vmatpush1.bf16.msra.mxu0 %v1507
        %1573 = vmatprep.subr.bf16.mxu0 %v1510
        %1574 = vmatpush1.bf16.msra.mxu0 %v1509
        %1575 = vmatprep.subr.bf16.mxu0 %v1512
        %1576 = vmatpush1.bf16.msra.mxu0 %v1511
        %1577 = vmatprep.subr.bf16.mxu0 %v1514
        %1578 = vmatpush1.bf16.msra.mxu0 %v1513
        %1579 = vmatprep.subr.bf16.mxu0 %v1516
        %1580 = vmatpush1.bf16.msra.mxu0 %v1515
        %1581 = vmatprep.subr.bf16.mxu0 %v1518
        %1582 = vmatpush1.bf16.msra.mxu0 %v1517
        %1583 = vmatprep.subr.bf16.mxu0 %v1520
        %1584 = vmatpush1.bf16.msra.mxu0 %v1519
        %1585 = vmatprep.subr.bf16.mxu0 %v1522
        %1586 = vmatpush1.bf16.msra.mxu0 %v1521
        %1587 = vmatprep.subr.bf16.mxu0 %v1524
        %1588 = vmatpush1.bf16.msra.mxu0 %v1523
        %1589 = vmatprep.subr.bf16.mxu0 %v1526
        %1590 = vmatpush1.bf16.msra.mxu0 %v1525
        %1591 = vmatprep.subr.bf16.mxu0 %v1528
        %1592 = vmatpush1.bf16.msra.mxu0 %v1527
        %1593 = vmatprep.subr.bf16.mxu0 %v1530
        %1594 = vmatpush1.bf16.msra.mxu0 %v1529
        %1595 = vmatprep.subr.bf16.mxu0 %v1532
        %1596 = vmatpush1.bf16.msra.mxu0 %v1531
        %1597 = vmatprep.mubr.bf16.mxu0 %v1372
        %1598 = vmatmul.mubr.bf16.gmra.mrb[0].mxu0 %v1371
        %v1599 = vpop.f32.mrb[0].mxu0
        %v1600 = vadd.f32 0.0, %v1599
        %v1601 = vpop.f32.mrb[0].mxu0
        %v1602 = vadd.f32 0.0, %v1601
        %v1603 = vpop.f32.mrb[0].mxu0
        %v1604 = vpop.f32.mrb[0].mxu0
        %1605 = vdwg.mxu0
        %1606 = vmatprep.subr.bf16.mxu0 %v1502
        %1607 = vmatpush1.bf16.msra.mxu0 %v1501
        %1608 = vmatprep.subr.bf16.mxu0 %v1504
        %1609 = vmatpush1.bf16.msra.mxu0 %v1503
        %1610 = vmatprep.subr.bf16.mxu0 %v1506
        %1611 = vmatpush1.bf16.msra.mxu0 %v1505
        %1612 = vmatprep.subr.bf16.mxu0 %v1508
        %1613 = vmatpush1.bf16.msra.mxu0 %v1507
        %1614 = vmatprep.subr.bf16.mxu0 %v1510
        %1615 = vmatpush1.bf16.msra.mxu0 %v1509
        %1616 = vmatprep.subr.bf16.mxu0 %v1512
        %1617 = vmatpush1.bf16.msra.mxu0 %v1511
        %1618 = vmatprep.subr.bf16.mxu0 %v1514
        %1619 = vmatpush1.bf16.msra.mxu0 %v1513
        %1620 = vmatprep.subr.bf16.mxu0 %v1516
        %1621 = vmatpush1.bf16.msra.mxu0 %v1515
        %1622 = vmatprep.subr.bf16.mxu0 %v1518
        %1623 = vmatpush1.bf16.msra.mxu0 %v1517
        %1624 = vmatprep.subr.bf16.mxu0 %v1520
        %1625 = vmatpush1.bf16.msra.mxu0 %v1519
        %1626 = vmatprep.subr.bf16.mxu0 %v1522
        %1627 = vmatpush1.bf16.msra.mxu0 %v1521
        %1628 = vmatprep.subr.bf16.mxu0 %v1524
        %1629 = vmatpush1.bf16.msra.mxu0 %v1523
        %1630 = vmatprep.subr.bf16.mxu0 %v1526
        %1631 = vmatpush1.bf16.msra.mxu0 %v1525
        %1632 = vmatprep.subr.bf16.mxu0 %v1528
        %1633 = vmatpush1.bf16.msra.mxu0 %v1527
        %1634 = vmatprep.subr.bf16.mxu0 %v1530
        %1635 = vmatpush1.bf16.msra.mxu0 %v1529
        %1636 = vmatprep.subr.bf16.mxu0 %v1532
        %1637 = vmatpush1.bf16.msra.mxu0 %v1531
        %1638 = vmatprep.mubr.bf16.mxu0 %v1366
        %1639 = vmatmul.mubr.bf16.gmra.mrb[0].mxu0 %v1365
        %v1640 = vpop.f32.mrb[0].mxu0
        %v1641 = vadd.f32 %v1600, %v1640
        %v1642 = vpop.f32.mrb[0].mxu0
        %v1643 = vadd.f32 %v1602, %v1642
        %v1644 = vpop.f32.mrb[0].mxu0
        %v1645 = vpop.f32.mrb[0].mxu0
        %1646 = vdwg.mxu0
        %v1647 = vrcp.pop %v1641
        %v1648 = vmul.f32 %v1362, %v1647
        %v1649 = vrcp.pop %v1643
        %v1650 = vmul.f32 %v1364, %v1649
        %1651 = vst [vmem:[%s324] sm:$0xff] %v1648
        %1652 = vst [vmem:[%s324 + $0x8] sm:$0xff] %v1650
        %s1653 = sand.u32 %s164, 1
        %s1654 = scalar_lea.sflag [#allocation4], %s1653
        %s1655 = sand.u32 %s164, 1
        %s1656 = smul.addr %s1655, 16
        %s1657 = scalar_lea.vmem [#allocation11], %s1656
        // Predicated region
        $region65: #{tpu_custom_call.1} parent=43 // pred_check
          %p1658 = pneg %p174
        $region66: #{tpu_custom_call.1} parent=43 // pred_check_branch
          %1660 = sbr.rel (%p1658) target = $region68
        $region67: #{tpu_custom_call.1} parent=43 // pred_region
          %s1662 = ssub.s32 256, 256
          %1663 = vsyncadd %s1654, %s1662
          %s1664 = smul.addr %s25, 2
          %s1665 = smul.addr %s1664, 128
          %s1666 = scalar_lea.hbm %s6, %s1665
          %s1668 = sshll.u32 %s1657, 4
          %s1669 = int_to_ptr.vmem [resolvable:$true] %s1668
          %1671 = dma.vmem_to_hbm [thread:$0]  %s1669, 256, %s1666, %s1654
        $region68: #{tpu_custom_call.1} parent=43 // pred_fallthru
          _
      $region44: #{tpu_custom_call.1} parent=5 // pred_fallthru
        _
      %p1672 = scmp.le.s32.totalorder 2, %s20
      // Predicated region
      $region69: #{tpu_custom_call.1} parent=5 // pred_check
        %p1673 = pneg %p1672
      $region70: #{tpu_custom_call.1} parent=5 // pred_check_branch
        %1675 = sbr.rel (%p1673) target = $region72
      $region71: #{tpu_custom_call.1} parent=5 // pred_region
        %s1676 = ssub.s32 %s20, 2
        // Predicated region
        $region73: #{tpu_custom_call.1} parent=71 // pred_check
          %p1677 = pneg %p180
        $region74: #{tpu_custom_call.1} parent=71 // pred_check_branch
          %1679 = sbr.rel (%p1677) target = $region76
        $region75: #{tpu_custom_call.1} parent=71 // pred_region
          %s1680 = sand.u32 %s165, 1
          %s1681 = scalar_lea.sflag [#allocation4], %s1680
          %s1682 = sand.u32 %s165, 1
          %s1683 = smul.addr %s1682, 16
          %s1684 = scalar_lea.vmem [#allocation11], %s1683
          %1685 = dma.done %s1681, 256
        $region76: #{tpu_custom_call.1} parent=71 // pred_fallthru
          _
      $region72: #{tpu_custom_call.1} parent=5 // pred_fallthru
        _
    $region6: #{tpu_custom_call.1} parent=1 // loop_footer
      %s24 = sadd.s32 1, %s20
    $region7: #{tpu_custom_call.1} parent=1 // loop_footer_branch
      %19 = sbr.rel target = $region3
    $region8: #{tpu_custom_call.1} parent=1 // loop_exit
      _
    %1686 = vsyncpa [#allocation3], 1
    %s1687 = scalar_lea.sflag [#allocation3], 1
    %1688 = vsyncpa %s1687, 1
    %1689 = vsyncpa [#allocation6], 1
    %1690 = vsyncpa [#allocation9], 1
    %1691 = vsyncpa [#allocation4], 1
    %s1692 = scalar_lea.sflag [#allocation4], 1
    %1693 = vsyncpa %s1692, 1

</llo_original>
